<compile_context>
chip_gen: v7x
topology: tpu7x:2x2x1
jax: 0.10.0
libtpu: 0.0.40
codegen_flags: <defaults>
</compile_context>

<pallas_src>
import functools

import jax
import jax.numpy as jnp
from jax.experimental import pallas as pl
from jax.experimental.pallas import tpu as pltpu

EPS_1E10 = 1e-10


# ---------------------------------------------------------------------------
# Kernel A: median depth per ray.
# ---------------------------------------------------------------------------
def _median_depth_kernel(w_ref, s_ref, e_ref, depth_ref):
    # w_ref/s_ref/e_ref : (TM, S) — rays on sublanes, samples on lanes.
    # depth_ref         : (TM, 1)
    w = w_ref[...].astype(jnp.float32)
    steps = 0.5 * (s_ref[...].astype(jnp.float32) + e_ref[...].astype(jnp.float32))
    tm, s = w.shape

    # Cumulative sum along samples via the MXU:  cw[r, i] = sum_{j<=i} w[r, j].
    rj = jax.lax.broadcasted_iota(jnp.int32, (s, s), 0)
    ci = jax.lax.broadcasted_iota(jnp.int32, (s, s), 1)
    tri = (rj <= ci).astype(jnp.float32)
    cw = jnp.dot(w, tri, preferred_element_type=jnp.float32)

    # searchsorted(cw, 0.5, side='left') clamped to [0, S-1].
    lane = jax.lax.broadcasted_iota(jnp.int32, (tm, s), 1)
    hit = cw >= 0.5
    idx = jnp.min(jnp.where(hit, lane, s - 1), axis=-1, keepdims=True)  # (TM, 1)

    # gather steps at idx via one-hot select + lane reduce.
    sel = lane == idx
    depth = jnp.sum(jnp.where(sel, steps, 0.0), axis=-1, keepdims=True)  # (TM, 1)
    depth_ref[...] = depth.astype(depth_ref.dtype)


# ---------------------------------------------------------------------------
# Kernel B: normalization + Sobel delta on the (zero-padded) depth image.
# ---------------------------------------------------------------------------
def _delta_kernel(scal_ref, dpad_ref, out_ref):
    # scal_ref : (2,) SMEM  — [near, far]
    # dpad_ref : (H+2, W+2) — raw depth, zero-padded ring
    # out_ref  : (H, W)
    near = scal_ref[0]
    far = scal_ref[1]
    inv = 1.0 / (far - near + EPS_1E10)

    dp = dpad_ref[...]
    hp, wp = dp.shape
    h, w = hp - 2, wp - 2

    row = jax.lax.broadcasted_iota(jnp.int32, dp.shape, 0)
    col = jax.lax.broadcasted_iota(jnp.int32, dp.shape, 1)
    interior = (row >= 1) & (row <= h) & (col >= 1) & (col <= w)

    dn = 1.0 - (dp - near) * inv
    dn = jnp.clip(dn, 0.0, 1.0)
    dn = jnp.where(interior, dn, 0.0)  # keep the zero-padding ring at exactly 0

    def sl(u, v):
        return dn[u:u + h, v:v + w]

    # conv2d (cross-correlation) with Sobel kernels, padding=1, then /8.
    gx = (-sl(0, 0) + sl(0, 2)
          - 2.0 * sl(1, 0) + 2.0 * sl(1, 2)
          - sl(2, 0) + sl(2, 2)) * 0.125
    gy = (-sl(0, 0) - 2.0 * sl(0, 1) - sl(0, 2)
          + sl(2, 0) + 2.0 * sl(2, 1) + sl(2, 2)) * 0.125

    out_ref[...] = jnp.sqrt(gx * gx + gy * gy).astype(out_ref.dtype)


# ---------------------------------------------------------------------------
# Wrapper: DeltaDepthRenderer.forward
# ---------------------------------------------------------------------------
@functools.partial(jax.jit, static_argnames=("tile_rays",))
def delta_depth_renderer_forward(weights, euclidean_starts, euclidean_ends,
                                 nears=None, fars=None, tile_rays: int = 256):
    """Pallas implementation of DeltaDepthRenderer.forward (median depth + Sobel delta).

    weights          : (B, H, W, S, 1)
    euclidean_starts : (B, H, W, S)
    euclidean_ends   : (B, H, W, S)
    returns delta    : (B, H, W, 1)
    """
    # TODO(synk): packed-sample path (ray_indices/num_rays) raises NotImplementedError
    # in the PyTorch median renderer and is not supported here either.
    B, H, W, S, _ = weights.shape
    assert euclidean_starts.shape == (B, H, W, S)
    assert euclidean_ends.shape == (B, H, W, S)
    dtype = weights.dtype
    R = B * H * W

    # Free reshapes only — no transpose of the big per-sample arrays.
    w2 = weights[..., 0].reshape(R, S)
    s2 = euclidean_starts.reshape(R, S)
    e2 = euclidean_ends.reshape(R, S)

    tm = max(8, min(int(tile_rays), ((R + 7) // 8) * 8))
    tm = ((tm + 7) // 8) * 8
    r_pad = ((R + tm - 1) // tm) * tm
    if r_pad != R:
        pad = ((0, r_pad - R), (0, 0))
        w2 = jnp.pad(w2, pad)
        s2 = jnp.pad(s2, pad)
        e2 = jnp.pad(e2, pad)

    depth_col = pl.pallas_call(
        _median_depth_kernel,
        out_shape=jax.ShapeDtypeStruct((r_pad, 1), jnp.float32),
        grid_spec=pltpu.PrefetchScalarGridSpec(
            num_scalar_prefetch=0,
            grid=(r_pad // tm,),
            in_specs=[
                pl.BlockSpec((tm, S), lambda i: (i, 0)),
                pl.BlockSpec((tm, S), lambda i: (i, 0)),
                pl.BlockSpec((tm, S), lambda i: (i, 0)),
            ],
            out_specs=pl.BlockSpec((tm, 1), lambda i: (i, 0)),
        ),
        compiler_params=pltpu.CompilerParams(
            dimension_semantics=("parallel",)),
    )(w2, s2, e2)

    depth = jax.lax.stop_gradient(depth_col[:R, 0])  # .detach()

    # TODO(synk): per-ray tensor-valued nears/fars are not supported (scalars only).
    near = jnp.min(depth) if nears is None else jnp.asarray(nears, jnp.float32)
    far = jnp.max(depth) if fars is None else jnp.asarray(fars, jnp.float32)
    scalars = jnp.stack([near.astype(jnp.float32), far.astype(jnp.float32)])

    depth_img = depth.reshape(B, H, W)
    depth_pad = jnp.pad(depth_img, ((0, 0), (1, 1), (1, 1)))  # zero padding=1

    delta = pl.pallas_call(
        _delta_kernel,
        out_shape=jax.ShapeDtypeStruct((B, H, W), dtype),
        grid_spec=pltpu.PrefetchScalarGridSpec(
            num_scalar_prefetch=0,
            grid=(B,),
            in_specs=[
                pl.BlockSpec(memory_space=pltpu.MemorySpace.SMEM),
                pl.BlockSpec((None, H + 2, W + 2), lambda b: (b, 0, 0)),
            ],
            out_specs=pl.BlockSpec((None, H, W), lambda b: (b, 0, 0)),
        ),
        compiler_params=pltpu.CompilerParams(
            dimension_semantics=("parallel",)),
    )(scalars, depth_pad)

    return delta[..., None]


# ---------------------------------------------------------------------------
# Pure-JAX reference (mirrors the PyTorch module).
# ---------------------------------------------------------------------------
def _reference_forward(weights, starts, ends, nears=None, fars=None):
    w = weights[..., 0]
    S = w.shape[-1]
    steps = 0.5 * (starts + ends)
    cw = jnp.cumsum(w, axis=-1)
    hit = cw >= 0.5
    idx = jnp.where(jnp.any(hit, axis=-1), jnp.argmax(hit, axis=-1), S)
    idx = jnp.clip(idx, 0, S - 1)
    depth = jnp.take_along_axis(steps, idx[..., None], axis=-1)  # (B,H,W,1)
    near = jnp.min(depth) if nears is None else nears
    far = jnp.max(depth) if fars is None else fars
    depth = 1.0 - (depth - near) / (far - near + EPS_1E10)
    depth = jnp.clip(depth, 0.0, 1.0)
    d = depth[..., 0]
    B, H, W = d.shape
    dp = jnp.pad(d, ((0, 0), (1, 1), (1, 1)))

    def sl(u, v):
        return dp[:, u:u + H, v:v + W]

    gx = (-sl(0, 0) + sl(0, 2) - 2.0 * sl(1, 0) + 2.0 * sl(1, 2)
          - sl(2, 0) + sl(2, 2)) / 8.0
    gy = (-sl(0, 0) - 2.0 * sl(0, 1) - sl(0, 2)
          + sl(2, 0) + 2.0 * sl(2, 1) + sl(2, 2)) / 8.0
    return jnp.sqrt(gx * gx + gy * gy)[..., None]


if __name__ == "__main__":
    key = jax.random.PRNGKey(0)
    k_w, k_s = jax.random.split(key)

    B, H, W, S = 2, 16, 16, 64
    raw = jax.random.uniform(k_w, (B, H, W, S, 1), dtype=jnp.float32)
    weights = raw / (jnp.sum(raw, axis=-2, keepdims=True) + 1e-6)
    starts = jnp.sort(
        jax.random.uniform(k_s, (B, H, W, S), dtype=jnp.float32,
                           minval=0.1, maxval=4.0), axis=-1)
    ends = starts + 0.05

    delta = delta_depth_renderer_forward(weights, starts, ends)
    delta = jax.block_until_ready(delta)

    ref = _reference_forward(weights, starts, ends)
    assert delta.shape == (B, H, W, 1), delta.shape
    max_err = float(jnp.max(jnp.abs(delta - ref)))
    assert jnp.allclose(delta, ref, atol=1e-5, rtol=1e-5), f"mismatch {max_err}"
    assert bool(jnp.all(delta >= 0.0)) and bool(jnp.all(delta <= 1.0))

    print("KERNEL_OK")
</pallas_src>

<mosaic_0001>
module attributes {stable_mosaic.version = 11 : i64} {
  func.func @_median_depth_kernel(%arg0: i32, %arg1: memref<256x64xf32, #tpu.memory_space<vmem>>, %arg2: memref<256x64xf32, #tpu.memory_space<vmem>>, %arg3: memref<256x64xf32, #tpu.memory_space<vmem>>, %arg4: memref<256x1xf32, #tpu.memory_space<vmem>>) attributes {dimension_semantics = [#tpu.dimension_semantics<parallel>], iteration_bounds = array<i64: 2>, scalar_prefetch = 0 : i64, scratch_operands = 0 : i64, tpu.core_type = #tpu.core_type<tc>, window_params = [{transform_indices = @transform_0, window_bounds = array<i64: 256, 64>}, {transform_indices = @transform_1, window_bounds = array<i64: 256, 64>}, {transform_indices = @transform_2, window_bounds = array<i64: 256, 64>}, {transform_indices = @transform_3, window_bounds = array<i64: 256, 1>}]} {
    %c0 = arith.constant 0 : index
    %c0_0 = arith.constant 0 : index
    %0 = vector.load %arg1[%c0, %c0_0] : memref<256x64xf32, #tpu.memory_space<vmem>>, vector<256x64xf32>
    %c0_1 = arith.constant 0 : index
    %c0_2 = arith.constant 0 : index
    %1 = vector.load %arg2[%c0_1, %c0_2] : memref<256x64xf32, #tpu.memory_space<vmem>>, vector<256x64xf32>
    %c0_3 = arith.constant 0 : index
    %c0_4 = arith.constant 0 : index
    %2 = vector.load %arg3[%c0_3, %c0_4] : memref<256x64xf32, #tpu.memory_space<vmem>>, vector<256x64xf32>
    %3 = arith.addf %1, %2 : vector<256x64xf32>
    %cst = arith.constant 5.000000e-01 : f32
    %4 = vector.broadcast %cst : f32 to vector<256x64xf32>
    %5 = arith.mulf %4, %3 : vector<256x64xf32>
    %6 = tpu.iota {dimensions = array<i32: 0>} : vector<64x64xi32>
    %7 = tpu.iota {dimensions = array<i32: 1>} : vector<64x64xi32>
    %8 = arith.cmpi sle, %6, %7 : vector<64x64xi32>
    %9 = arith.extui %8 : vector<64x64xi1> to vector<64x64xi32>
    %10 = arith.sitofp %9 : vector<64x64xi32> to vector<64x64xf32>
    %cst_5 = arith.constant dense<0.000000e+00> : vector<256x64xf32>
    %11 = tpu.matmul %0, %10, %cst_5 {dimension_numbers = #tpu.dot_dimension_numbers<[1], [0], [0], [1], [0, 0, 1, 1], [], []>} : vector<256x64xf32>, vector<64x64xf32>, vector<256x64xf32> -> vector<256x64xf32>
    %12 = tpu.iota {dimensions = array<i32: 1>} : vector<256x64xi32>
    %cst_6 = arith.constant 5.000000e-01 : f32
    %13 = vector.broadcast %cst_6 : f32 to vector<256x64xf32>
    %14 = arith.cmpf oge, %11, %13 : vector<256x64xf32>
    %c63_i32 = arith.constant 63 : i32
    %15 = vector.broadcast %c63_i32 : i32 to vector<256x64xi32>
    %16 = arith.select %14, %12, %15 : vector<256x64xi1>, vector<256x64xi32>
    %cst_7 = arith.constant dense<2147483647> : vector<256xi32>
    %17 = vector.multi_reduction <minsi>, %16, %cst_7 [1] : vector<256x64xi32> to vector<256xi32>
    %18 = vector.shape_cast %17 : vector<256xi32> to vector<256x1xi32>
    %19 = vector.broadcast %18 : vector<256x1xi32> to vector<256x64xi32>
    %20 = arith.cmpi eq, %12, %19 : vector<256x64xi32>
    %cst_8 = arith.constant 0.000000e+00 : f32
    %21 = vector.broadcast %cst_8 : f32 to vector<256x64xf32>
    %22 = arith.select %20, %5, %21 : vector<256x64xi1>, vector<256x64xf32>
    %cst_9 = arith.constant dense<0.000000e+00> : vector<256xf32>
    %23 = vector.multi_reduction <add>, %22, %cst_9 [1] : vector<256x64xf32> to vector<256xf32>
    %24 = vector.shape_cast %23 : vector<256xf32> to vector<256x1xf32>
    %c0_10 = arith.constant 0 : index
    %c0_11 = arith.constant 0 : index
    %25 = vector.load %arg4[%c0_10, %c0_11] : memref<256x1xf32, #tpu.memory_space<vmem>>, vector<256x1xf32>
    tpu.vector_store %arg4[%c0_10, %c0_11], %24 {strides = array<i32>} : memref<256x1xf32, #tpu.memory_space<vmem>>, vector<256x1xf32>,
    return
  }
  func.func @transform_0(%arg0: i32) -> (i32, i32) {
    %c0_i32 = arith.constant 0 : i32
    %c0_i32_0 = arith.constant 0 : i32
    return %arg0, %c0_i32 : i32, i32
  }
  func.func @transform_1(%arg0: i32) -> (i32, i32) {
    %c0_i32 = arith.constant 0 : i32
    %c0_i32_0 = arith.constant 0 : i32
    return %arg0, %c0_i32 : i32, i32
  }
  func.func @transform_2(%arg0: i32) -> (i32, i32) {
    %c0_i32 = arith.constant 0 : i32
    %c0_i32_0 = arith.constant 0 : i32
    return %arg0, %c0_i32 : i32, i32
  }
  func.func @transform_3(%arg0: i32) -> (i32, i32) {
    %c0_i32 = arith.constant 0 : i32
    %c0_i32_0 = arith.constant 0 : i32
    return %arg0, %c0_i32 : i32, i32
  }
}

module attributes {stable_mosaic.version = 11 : i64} {
  func.func @_delta_kernel(%arg0: i32, %arg1: memref<2xf32, #tpu.memory_space<smem>>, %arg2: memref<1x18x18xf32, #tpu.memory_space<vmem>>, %arg3: memref<1x16x16xf32, #tpu.memory_space<vmem>>) attributes {dimension_semantics = [#tpu.dimension_semantics<parallel>], iteration_bounds = array<i64: 2>, scalar_prefetch = 0 : i64, scratch_operands = 0 : i64, tpu.core_type = #tpu.core_type<tc>, window_params = [{transform_indices = @transform_0, window_bounds = array<i64: 2>}, {transform_indices = @transform_1, window_bounds = array<i64: 1, 18, 18>}, {transform_indices = @transform_2, window_bounds = array<i64: 1, 16, 16>}]} {
    %c0 = arith.constant 0 : index
    %0 = memref.load %arg1[%c0] : memref<2xf32, #tpu.memory_space<smem>>
    %c1 = arith.constant 1 : index
    %1 = memref.load %arg1[%c1] : memref<2xf32, #tpu.memory_space<smem>>
    %2 = arith.subf %1, %0 : f32
    %cst = arith.constant 1.000000e-10 : f32
    %3 = arith.addf %2, %cst : f32
    %cst_0 = arith.constant 1.000000e+00 : f32
    %4 = arith.divf %cst_0, %3 : f32
    %c0_1 = arith.constant 0 : index
    %c0_2 = arith.constant 0 : index
    %c0_3 = arith.constant 0 : index
    %5 = vector.load %arg2[%c0_1, %c0_2, %c0_3] : memref<1x18x18xf32, #tpu.memory_space<vmem>>, vector<1x18x18xf32>
    %6 = vector.shape_cast %5 : vector<1x18x18xf32> to vector<18x18xf32>
    %7 = tpu.iota {dimensions = array<i32: 0>} : vector<18x18xi32>
    %8 = tpu.iota {dimensions = array<i32: 1>} : vector<18x18xi32>
    %c1_i32 = arith.constant 1 : i32
    %9 = vector.broadcast %c1_i32 : i32 to vector<18x18xi32>
    %10 = arith.cmpi sge, %7, %9 : vector<18x18xi32>
    %c16_i32 = arith.constant 16 : i32
    %11 = vector.broadcast %c16_i32 : i32 to vector<18x18xi32>
    %12 = arith.cmpi sle, %7, %11 : vector<18x18xi32>
    %13 = arith.andi %10, %12 : vector<18x18xi1>
    %c1_i32_4 = arith.constant 1 : i32
    %14 = vector.broadcast %c1_i32_4 : i32 to vector<18x18xi32>
    %15 = arith.cmpi sge, %8, %14 : vector<18x18xi32>
    %16 = arith.andi %13, %15 : vector<18x18xi1>
    %c16_i32_5 = arith.constant 16 : i32
    %17 = vector.broadcast %c16_i32_5 : i32 to vector<18x18xi32>
    %18 = arith.cmpi sle, %8, %17 : vector<18x18xi32>
    %19 = arith.andi %16, %18 : vector<18x18xi1>
    %20 = vector.broadcast %0 : f32 to vector<18x18xf32>
    %21 = arith.subf %6, %20 : vector<18x18xf32>
    %22 = vector.broadcast %4 : f32 to vector<18x18xf32>
    %23 = arith.mulf %21, %22 : vector<18x18xf32>
    %cst_6 = arith.constant 1.000000e+00 : f32
    %24 = vector.broadcast %cst_6 : f32 to vector<18x18xf32>
    %25 = arith.subf %24, %23 : vector<18x18xf32>
    %cst_7 = arith.constant 0.000000e+00 : f32
    %cst_8 = arith.constant 1.000000e+00 : f32
    %26 = vector.broadcast %cst_7 : f32 to vector<18x18xf32>
    %27 = arith.maximumf %26, %25 : vector<18x18xf32>
    %28 = vector.broadcast %cst_8 : f32 to vector<18x18xf32>
    %29 = arith.minimumf %28, %27 : vector<18x18xf32>
    %cst_9 = arith.constant 0.000000e+00 : f32
    %30 = vector.broadcast %cst_9 : f32 to vector<18x18xf32>
    %31 = arith.select %19, %29, %30 : vector<18x18xi1>, vector<18x18xf32>
    %32 = vector.extract_strided_slice %31 {offsets = [0, 0], sizes = [16, 16], strides = [1, 1]} : vector<18x18xf32> to vector<16x16xf32>
    %cst_10 = arith.constant 0.000000e+00 : f32
    %33 = vector.broadcast %cst_10 : f32 to vector<16x16xf32>
    %34 = arith.subf %33, %32 : vector<16x16xf32>
    %35 = vector.extract_strided_slice %31 {offsets = [0, 2], sizes = [16, 16], strides = [1, 1]} : vector<18x18xf32> to vector<16x16xf32>
    %36 = arith.addf %34, %35 : vector<16x16xf32>
    %37 = vector.extract_strided_slice %31 {offsets = [1, 0], sizes = [16, 16], strides = [1, 1]} : vector<18x18xf32> to vector<16x16xf32>
    %cst_11 = arith.constant 2.000000e+00 : f32
    %38 = vector.broadcast %cst_11 : f32 to vector<16x16xf32>
    %39 = arith.mulf %38, %37 : vector<16x16xf32>
    %40 = arith.subf %36, %39 : vector<16x16xf32>
    %41 = vector.extract_strided_slice %31 {offsets = [1, 2], sizes = [16, 16], strides = [1, 1]} : vector<18x18xf32> to vector<16x16xf32>
    %cst_12 = arith.constant 2.000000e+00 : f32
    %42 = vector.broadcast %cst_12 : f32 to vector<16x16xf32>
    %43 = arith.mulf %42, %41 : vector<16x16xf32>
    %44 = arith.addf %40, %43 : vector<16x16xf32>
    %45 = vector.extract_strided_slice %31 {offsets = [2, 0], sizes = [16, 16], strides = [1, 1]} : vector<18x18xf32> to vector<16x16xf32>
    %46 = arith.subf %44, %45 : vector<16x16xf32>
    %47 = vector.extract_strided_slice %31 {offsets = [2, 2], sizes = [16, 16], strides = [1, 1]} : vector<18x18xf32> to vector<16x16xf32>
    %48 = arith.addf %46, %47 : vector<16x16xf32>
    %cst_13 = arith.constant 1.250000e-01 : f32
    %49 = vector.broadcast %cst_13 : f32 to vector<16x16xf32>
    %50 = arith.mulf %48, %49 : vector<16x16xf32>
    %51 = vector.extract_strided_slice %31 {offsets = [0, 0], sizes = [16, 16], strides = [1, 1]} : vector<18x18xf32> to vector<16x16xf32>
    %cst_14 = arith.constant 0.000000e+00 : f32
    %52 = vector.broadcast %cst_14 : f32 to vector<16x16xf32>
    %53 = arith.subf %52, %51 : vector<16x16xf32>
    %54 = vector.extract_strided_slice %31 {offsets = [0, 1], sizes = [16, 16], strides = [1, 1]} : vector<18x18xf32> to vector<16x16xf32>
    %cst_15 = arith.constant 2.000000e+00 : f32
    %55 = vector.broadcast %cst_15 : f32 to vector<16x16xf32>
    %56 = arith.mulf %55, %54 : vector<16x16xf32>
    %57 = arith.subf %53, %56 : vector<16x16xf32>
    %58 = vector.extract_strided_slice %31 {offsets = [0, 2], sizes = [16, 16], strides = [1, 1]} : vector<18x18xf32> to vector<16x16xf32>
    %59 = arith.subf %57, %58 : vector<16x16xf32>
    %60 = vector.extract_strided_slice %31 {offsets = [2, 0], sizes = [16, 16], strides = [1, 1]} : vector<18x18xf32> to vector<16x16xf32>
    %61 = arith.addf %59, %60 : vector<16x16xf32>
    %62 = vector.extract_strided_slice %31 {offsets = [2, 1], sizes = [16, 16], strides = [1, 1]} : vector<18x18xf32> to vector<16x16xf32>
    %cst_16 = arith.constant 2.000000e+00 : f32
    %63 = vector.broadcast %cst_16 : f32 to vector<16x16xf32>
    %64 = arith.mulf %63, %62 : vector<16x16xf32>
    %65 = arith.addf %61, %64 : vector<16x16xf32>
    %66 = vector.extract_strided_slice %31 {offsets = [2, 2], sizes = [16, 16], strides = [1, 1]} : vector<18x18xf32> to vector<16x16xf32>
    %67 = arith.addf %65, %66 : vector<16x16xf32>
    %cst_17 = arith.constant 1.250000e-01 : f32
    %68 = vector.broadcast %cst_17 : f32 to vector<16x16xf32>
    %69 = arith.mulf %67, %68 : vector<16x16xf32>
    %70 = arith.mulf %50, %50 : vector<16x16xf32>
    %71 = arith.mulf %69, %69 : vector<16x16xf32>
    %72 = arith.addf %70, %71 : vector<16x16xf32>
    %73 = math.sqrt %72 : vector<16x16xf32>
    %c0_18 = arith.constant 0 : index
    %c0_19 = arith.constant 0 : index
    %c0_20 = arith.constant 0 : index
    %74 = vector.load %arg3[%c0_18, %c0_19, %c0_20] : memref<1x16x16xf32, #tpu.memory_space<vmem>>, vector<1x16x16xf32>
    %75 = vector.shape_cast %74 : vector<1x16x16xf32> to vector<16x16xf32>
    %76 = vector.shape_cast %73 : vector<16x16xf32> to vector<1x16x16xf32>
    tpu.vector_store %arg3[%c0_18, %c0_19, %c0_20], %76 {strides = array<i32>} : memref<1x16x16xf32, #tpu.memory_space<vmem>>, vector<1x16x16xf32>,
    return
  }
  func.func @transform_0(%arg0: i32) -> i32 {
    %c0_i32 = arith.constant 0 : i32
    %c0_i32_0 = arith.constant 0 : i32
    return %c0_i32 : i32
  }
  func.func @transform_1(%arg0: i32) -> (i32, i32, i32) {
    %c0_i32 = arith.constant 0 : i32
    %c0_i32_0 = arith.constant 0 : i32
    %c0_i32_1 = arith.constant 0 : i32
    return %arg0, %c0_i32, %c0_i32_0 : i32, i32, i32
  }
  func.func @transform_2(%arg0: i32) -> (i32, i32, i32) {
    %c0_i32 = arith.constant 0 : i32
    %c0_i32_0 = arith.constant 0 : i32
    %c0_i32_1 = arith.constant 0 : i32
    return %arg0, %c0_i32, %c0_i32_0 : i32, i32, i32
  }
}

</mosaic_0001>

<llo_original>
// kernel: squeeze.5
$region0: #{squeeze.5}
  %s0 = inlined_call_operand.vmem [shape: f32[512], index: 0, kind: input, shape index: {}]
  %s1 = inlined_call_operand.vmem [shape: f32[2,16,16], index: 1, kind: output, shape index: {}]
  $region1: #{squeeze.5} parent=0
    #allocation0 [shape = 'u8[4096]{0}', space=vmem, size = 0x1000, scoped, tag = 'scoped mem for input reshape']
    %s3 = sshllo.u32 0, 4
    %v4 = vld [vmem:[%s0] sm:%s3]
    %5 = vst [vmem:[#allocation0] sm:%s3] %v4
    %v6 = vld [vmem:[#allocation0] sm:$0xf]
    %vm7 = vcmask 130048
    %8 = vst.msk [vmem:[%s1] ss:$8 sm:$0xf] %vm7, %v6
    %v9 = vld [vmem:[#allocation0] sm:$0xf]
    %10 = vrot.lane.b32.xlu0 %v9, 112
    %v11 = vpop.permute.xlu0 %10
    %vm12 = vcmask 130048
    %s13 = scalar_lea.vmem %s1, 1
    %14 = vst.msk [vmem:[%s13] ss:$8 sm:$0xf] %vm12, %v11
    %v15 = vld [vmem:[#allocation0] sm:$0xf]
    %16 = vrot.lane.b32.xlu0 %v15, 96
    %v17 = vpop.permute.xlu0 %16
    %vm18 = vcmask 130048
    %s19 = scalar_lea.vmem %s1, 2
    %20 = vst.msk [vmem:[%s19] ss:$8 sm:$0xf] %vm18, %v17
    %v21 = vld [vmem:[#allocation0] sm:$0xf]
    %22 = vrot.lane.b32.xlu0 %v21, 80
    %v23 = vpop.permute.xlu0 %22
    %vm24 = vcmask 130048
    %s25 = scalar_lea.vmem %s1, 3
    %26 = vst.msk [vmem:[%s25] ss:$8 sm:$0xf] %vm24, %v23
    %v27 = vld [vmem:[#allocation0] sm:$0xf]
    %28 = vrot.lane.b32.xlu0 %v27, 64
    %v29 = vpop.permute.xlu0 %28
    %vm30 = vcmask 130048
    %s31 = scalar_lea.vmem %s1, 4
    %32 = vst.msk [vmem:[%s31] ss:$8 sm:$0xf] %vm30, %v29
    %v33 = vld [vmem:[#allocation0] sm:$0xf]
    %34 = vrot.lane.b32.xlu0 %v33, 48
    %v35 = vpop.permute.xlu0 %34
    %vm36 = vcmask 130048
    %s37 = scalar_lea.vmem %s1, 5
    %38 = vst.msk [vmem:[%s37] ss:$8 sm:$0xf] %vm36, %v35
    %v39 = vld [vmem:[#allocation0] sm:$0xf]
    %40 = vrot.lane.b32.xlu0 %v39, 32
    %v41 = vpop.permute.xlu0 %40
    %vm42 = vcmask 130048
    %s43 = scalar_lea.vmem %s1, 6
    %44 = vst.msk [vmem:[%s43] ss:$8 sm:$0xf] %vm42, %v41
    %v45 = vld [vmem:[#allocation0] sm:$0xf]
    %46 = vrot.lane.b32.xlu0 %v45, 16
    %v47 = vpop.permute.xlu0 %46
    %vm48 = vcmask 130048
    %s49 = scalar_lea.vmem %s1, 7
    %50 = vst.msk [vmem:[%s49] ss:$8 sm:$0xf] %vm48, %v47

// kernel: delta_depth_renderer_forward.3
$region0: #{delta_depth_renderer_forward.3}
  #allocation0 [shape = 'u32[]', space=smem, size = 0x4, offset = 0x4, fixed_abs, tag = 'smem constant byte address 0x4 - core index']
  #allocation1 [shape = 'u32[144,128]{1,0:T(1,128)}', space=vmem, size = 0x12000, scoped, tag = 'internal scratch']
  %s0 = inlined_call_operand.vmem [shape: f32[2], index: 0, kind: input, shape index: {}]
  %s1 = inlined_call_operand.vmem [shape: f32[2,18,18], index: 1, kind: input, shape index: {}]
  %s2 = inlined_call_operand.hbm [shape: f32[2,16,16], index: 2, kind: output, shape index: {}]
  %s3 = sld [smem:[#allocation0]]
  $region45: #{delta_depth_renderer_forward.3} parent=0
    _
  %s5 = ssub.s32 1, %s3
  %s6 = scalar_select 0, %s5, %s3
  $region1: #{delta_depth_renderer_forward.3} parent=0
    #allocation2 [shape = 'u8[512]{0}', space=smem, size = 0x200, scoped, tag = 'input window, operand 0, single buffered']
    #allocation3 [shape = 's32[2]{0}', space=sflag, size = 0x8, scoped, tag = 'scoped memory for delta_depth_renderer_forward.3']
    #allocation4 [shape = 's32[2]{0}', space=sflag, size = 0x8, scoped, tag = 'scoped memory for delta_depth_renderer_forward.3']
    #allocation5 [shape = 'u8[16384]{0}', space=vmem, size = 0x4000, scoped, tag = 'output window, operand 0']
    %7 = vsyncpa [#allocation4], 0
    %8 = vsyncpa [#allocation3], 0
    %s9 = scalar_lea.sflag [#allocation3], 1
    %10 = vsyncpa %s9, 0
    loop: start=0, step=1, limit=4
    $region2: #{delta_depth_renderer_forward.3} parent=1 // loop_pre_header
      _
    $region3: #{delta_depth_renderer_forward.3} parent=1 // loop_header
      %s12 = sphi 0, %s16
      %p13 = scmp.ge.s32.totalorder %s12, 4
      %s20 = sphi 0, %s20
      %s22 = sphi 0, %s20
      %s23 = sphi 0, %s22
      %s37 = sphi 0, %s23
      %s43 = sphi 0, %s45
      %s46 = sphi 0, %s43
      %s47 = sphi 0, %s46
      %s63 = sphi 0, %s47
      %s69 = sphi 0, %s71
      %s72 = sphi 0, %s69
      %s73 = sphi 0, %s72
      %s89 = sphi 0, %s73
    $region4: #{delta_depth_renderer_forward.3} parent=1 // loop_header_branch
      %15 = sbr.rel (%p13) target = $region8
    $region5: #{delta_depth_renderer_forward.3} parent=1 // loop_body
      %s17 = ssub.s32 %s12, 1
      %s18 = ssub.s32 %s12, 2
      %s19 = sadd.s32 %s12, 1
      %s21 = sadd.s32 %s20, 1
      %p24 = scmp.eq.s32.totalorder %s12, 1
      %p25 = scmp.ne.s32.totalorder %s20, %s22
      %p26 = scmp.eq.s32.totalorder %s12, 0
      %p27 = por %p25, %p26
      %p28 = scmp.ne.s32.totalorder %s20, %s22
      %p29 = scmp.eq.s32.totalorder %s17, 1
      %p30 = por %p28, %p29
      %p31 = scmp.ne.s32.totalorder %s22, %s23
      %p32 = scmp.eq.s32.totalorder %s17, 0
      %p33 = por %p31, %p32
      %p34 = scmp.ne.s32.totalorder %s22, %s23
      %p35 = scmp.eq.s32.totalorder %s18, 1
      %p36 = por %p34, %p35
      %p38 = scmp.ne.s32.totalorder %s23, %s37
      %p39 = scmp.eq.s32.totalorder %s18, 0
      %p40 = por %p38, %p39
      %s41 = ssub.s32 %s12, %s19
      %p42 = scmp.eq.s32.totalorder %s41, 0
      %s44 = sadd.s32 %s43, 1
      %s45 = scalar_select %p42, %s43, %s44
      %p48 = pneg %p42
      %p49 = scmp.eq.s32.totalorder %s12, 1
      %p50 = por %p48, %p49
      %p51 = scmp.ne.s32.totalorder %s43, %s46
      %p52 = scmp.eq.s32.totalorder %s12, 0
      %p53 = por %p51, %p52
      %p54 = scmp.ne.s32.totalorder %s43, %s46
      %p55 = scmp.eq.s32.totalorder %s17, 1
      %p56 = por %p54, %p55
      %p57 = scmp.ne.s32.totalorder %s46, %s47
      %p58 = scmp.eq.s32.totalorder %s17, 0
      %p59 = por %p57, %p58
      %p60 = scmp.ne.s32.totalorder %s46, %s47
      %p61 = scmp.eq.s32.totalorder %s18, 1
      %p62 = por %p60, %p61
      %p64 = scmp.ne.s32.totalorder %s47, %s63
      %p65 = scmp.eq.s32.totalorder %s18, 0
      %p66 = por %p64, %p65
      %s67 = ssub.s32 %s12, %s19
      %p68 = scmp.eq.s32.totalorder %s67, 0
      %s70 = sadd.s32 %s69, 1
      %s71 = scalar_select %p68, %s69, %s70
      %p74 = pneg %p68
      %p75 = scmp.eq.s32.totalorder %s12, 1
      %p76 = por %p74, %p75
      %p77 = scmp.ne.s32.totalorder %s69, %s72
      %p78 = scmp.eq.s32.totalorder %s12, 0
      %p79 = por %p77, %p78
      %p80 = scmp.ne.s32.totalorder %s69, %s72
      %p81 = scmp.eq.s32.totalorder %s17, 1
      %p82 = por %p80, %p81
      %p83 = scmp.ne.s32.totalorder %s72, %s73
      %p84 = scmp.eq.s32.totalorder %s17, 0
      %p85 = por %p83, %p84
      %p86 = scmp.ne.s32.totalorder %s72, %s73
      %p87 = scmp.eq.s32.totalorder %s18, 1
      %p88 = por %p86, %p87
      %p90 = scmp.ne.s32.totalorder %s73, %s89
      %p91 = scmp.eq.s32.totalorder %s18, 0
      %p92 = por %p90, %p91
      %p93 = scmp.le.s32.totalorder 1, %s12
      %p94 = scmp.lt.s32.totalorder %s12, 3
      %p95 = pnand %p93, %p94
      %p96 = pneg %p95
      // Predicated region
      $region9: #{delta_depth_renderer_forward.3} parent=5 // pred_check
        _
      $region10: #{delta_depth_renderer_forward.3} parent=5 // pred_check_branch
        %98 = sbr.rel (%p95) target = $region12
      $region11: #{delta_depth_renderer_forward.3} parent=5 // pred_region
        %s99 = ssub.s32 %s12, 1
        // Predicated region
        $region13: #{delta_depth_renderer_forward.3} parent=11 // pred_check
          %p100 = pneg %p33
        $region14: #{delta_depth_renderer_forward.3} parent=11 // pred_check_branch
          %102 = sbr.rel (%p100) target = $region16
        $region15: #{delta_depth_renderer_forward.3} parent=11 // pred_region
          %s104 = ssub.s32 16, 16
          %105 = vsyncadd [#allocation4], %s104
          %s107 = sshll.u32 %s0, 4
          %s108 = int_to_ptr.vmem [resolvable:$true] %s107
          %110 = dma.vmem_to_smem %s108, 16, [#allocation2], [#allocation4]
        $region16: #{delta_depth_renderer_forward.3} parent=11 // pred_fallthru
          _
      $region12: #{delta_depth_renderer_forward.3} parent=5 // pred_fallthru
        _
      %p111 = scmp.lt.s32.totalorder %s12, 2
      // Predicated region
      $region17: #{delta_depth_renderer_forward.3} parent=5 // pred_check
        %p112 = pneg %p111
      $region18: #{delta_depth_renderer_forward.3} parent=5 // pred_check_branch
        %114 = sbr.rel (%p112) target = $region20
      $region19: #{delta_depth_renderer_forward.3} parent=5 // pred_region
        // Predicated region
        $region21: #{delta_depth_renderer_forward.3} parent=19 // pred_check
          %p115 = pneg %p53
        $region22: #{delta_depth_renderer_forward.3} parent=19 // pred_check_branch
          %117 = sbr.rel (%p115) target = $region24
        $region23: #{delta_depth_renderer_forward.3} parent=19 // pred_region
          %p118 = scmp.lt.s32.totalorder %s12, 1
          %s119 = scalar_select %p118, %s12, 1
          %s120 = smul.addr %s119, 3
          %s121 = smul.addr %s120, 8
          %s122 = scalar_lea.vmem %s1, %s121
        $region24: #{delta_depth_renderer_forward.3} parent=19 // pred_fallthru
          _
      $region20: #{delta_depth_renderer_forward.3} parent=5 // pred_fallthru
        _
      %p123 = scmp.le.s32.totalorder 1, %s12
      %p124 = scmp.lt.s32.totalorder %s12, 3
      %p125 = pnand %p123, %p124
      %p126 = pneg %p125
      // Predicated region
      $region25: #{delta_depth_renderer_forward.3} parent=5 // pred_check
        _
      $region26: #{delta_depth_renderer_forward.3} parent=5 // pred_check_branch
        %128 = sbr.rel (%p125) target = $region28
      $region27: #{delta_depth_renderer_forward.3} parent=5 // pred_region
        %s129 = ssub.s32 %s12, 1
        // Predicated region
        $region29: #{delta_depth_renderer_forward.3} parent=27 // pred_check
          %p130 = pneg %p33
        $region30: #{delta_depth_renderer_forward.3} parent=27 // pred_check_branch
          %132 = sbr.rel (%p130) target = $region32
        $region31: #{delta_depth_renderer_forward.3} parent=27 // pred_region
          %133 = dma.done [#allocation4], 16
        $region32: #{delta_depth_renderer_forward.3} parent=27 // pred_fallthru
          _
        %134 = sfence
        %p135 = pneg %p33
        %p136 = pneg %p30
        %p137 = scmp.lt.s32.totalorder %s17, 1
        %s138 = scalar_select %p137, %s17, 1
        %s139 = smul.addr %s138, 3
        %s140 = smul.addr %s139, 8
        %s141 = scalar_lea.vmem %s1, %s140
        %p142 = pneg %p59
        %p143 = pneg %p56
        %p144 = pneg %p85
        %p145 = pneg %p82
        %s146 = sand.u32 %s72, 1
        %s147 = scalar_lea.sflag [#allocation3], %s146
        %s148 = sand.u32 %s72, 1
        %s149 = smul.addr %s148, 16
        %s150 = scalar_lea.vmem [#allocation5], %s149
        %p151 = scmp.lt.s32.totalorder %s17, 1
        %s152 = scalar_select %p151, %s17, 1
        %s153 = smul.addr %s152, 3
        %s154 = smul.addr %s153, 8
        %s155 = scalar_lea.vmem %s1, %s154
        %s156 = sld [smem:[#allocation2]]
        %s157 = sld [smem:[#allocation2 + $0x1]]
        %s158 = ssub.f32 %s157, %s156
        %s159 = sadd.f32 %s158, 1e-10
        %v160 = vstv %s159
        %v161 = vrcp.pop %v160
        %s162 = vtos %v161
        %v163 = vld [vmem:[%s155] sm:$0xff]
        %v164 = vld [vmem:[%s155 + $0x8] sm:$0xff]
        %v165 = vld [vmem:[%s155 + $0x10] sm:$0x3]
        %v166 = vlaneseq
        %v167 = vshrl.u32 %v166, 7
        %v168 = vadd.s32 %v167, 8
        %v169 = vadd.s32 %v167, 16
        %v170 = vlaneseq
        %v171 = vand.u32 %v170, 127
        %vm172 = vcmp.ge.s32.totalorder %v167, 1
        %vm173 = vcmp.ge.s32.totalorder %v168, 1
        %vm174 = vcmp.ge.s32.totalorder %v169, 1
        %vm175 = vcmp.le.s32.totalorder %v167, 16
        %vm176 = vcmp.le.s32.totalorder %v168, 16
        %vm177 = vcmp.le.s32.totalorder %v169, 16
        %vm178 = vmand %vm172, %vm175
        %vm179 = vmand %vm173, %vm176
        %vm180 = vmand %vm174, %vm177
        %vm181 = vcmp.ge.s32.totalorder %v171, 1
        %vm182 = vmand %vm178, %vm181
        %vm183 = vmand %vm179, %vm181
        %vm184 = vmand %vm180, %vm181
        %vm185 = vcmp.le.s32.totalorder %v171, 16
        %vm186 = vmand %vm182, %vm185
        %vm187 = vmand %vm183, %vm185
        %vm188 = vmand %vm184, %vm185
        %v189 = vstv %s156
        %v190 = vsub.f32 %v163, %v189
        %v191 = vsub.f32 %v164, %v189
        %v192 = vsub.f32 %v165, %v189
        %v193 = vstv %s162
        %v194 = vmul.f32 %v190, %v193
        %v195 = vmul.f32 %v191, %v193
        %v196 = vmul.f32 %v192, %v193
        %v197 = vsub.f32 1.0, %v194
        %v198 = vsub.f32 1.0, %v195
        %v199 = vsub.f32 1.0, %v196
        %v200 = vmax.f32 %v197, 0.0
        %v201 = vmax.f32 %v198, 0.0
        %v202 = vmax.f32 %v199, 0.0
        %v203 = vmin.f32 %v200, 1.0
        %v204 = vmin.f32 %v201, 1.0
        %v205 = vmin.f32 %v202, 1.0
        %v206 = vsel %vm186, %v203, 0.0
        %v207 = vsel %vm187, %v204, 0.0
        %v208 = vsel %vm188, %v205, 0.0
        %v209 = vsub.f32 0.0, %v206
        %v210 = vsub.f32 0.0, %v207
        %213 = vrot.lane.b32.xlu0 %v206, 126
        %v214 = vpop.permute.xlu0 %213
        %215 = vrot.lane.b32.xlu0 %v207, 126
        %v216 = vpop.permute.xlu0 %215
        %v219 = vadd.f32 %v209, %v214
        %v220 = vadd.f32 %v210, %v216
        %v221 = vmul.f32 %v206, 2.0
        %v222 = vmul.f32 %v207, 2.0
        %v223 = vmul.f32 %v208, 2.0
        %vm227 = vcmask 1046528
        %v228 = vrot.slane %v221, 1
        %v229 = vrot.slane %v222, 1
        %v230 = vsel %vm227, %v228, %v229
        %v231 = vrot.slane %v223, 1
        %v232 = vsel %vm227, %v229, %v231
        %v235 = vsub.f32 %v219, %v230
        %v236 = vsub.f32 %v220, %v232
        %237 = vrot.lane.b32.xlu0 %v230, 126
        %v238 = vpop.permute.xlu0 %237
        %239 = vrot.lane.b32.xlu0 %v232, 126
        %v240 = vpop.permute.xlu0 %239
        %v243 = vadd.f32 %v235, %v238
        %v244 = vadd.f32 %v236, %v240
        %vm246 = vcmask 1045504
        %v247 = vrot.slane %v206, 2
        %v248 = vrot.slane %v207, 2
        %v249 = vsel %vm246, %v247, %v248
        %v250 = vrot.slane %v208, 2
        %v251 = vsel %vm246, %v248, %v250
        %v254 = vsub.f32 %v243, %v249
        %v255 = vsub.f32 %v244, %v251
        %256 = vrot.lane.b32.xlu0 %v249, 126
        %v257 = vpop.permute.xlu0 %256
        %258 = vrot.lane.b32.xlu0 %v251, 126
        %v259 = vpop.permute.xlu0 %258
        %v262 = vadd.f32 %v254, %v257
        %v263 = vadd.f32 %v255, %v259
        %v264 = vmul.f32 %v262, 0.125
        %v265 = vmul.f32 %v263, 0.125
        %266 = vrot.lane.b32.xlu0 %v221, 127
        %v267 = vpop.permute.xlu0 %266
        %268 = vrot.lane.b32.xlu0 %v222, 127
        %v269 = vpop.permute.xlu0 %268
        %v272 = vsub.f32 %v209, %v267
        %v273 = vsub.f32 %v210, %v269
        %v274 = vsub.f32 %v272, %v214
        %v275 = vsub.f32 %v273, %v216
        %v276 = vadd.f32 %v274, %v249
        %v277 = vadd.f32 %v275, %v251
        %v278 = vrot.slane %v221, 2
        %v279 = vrot.slane %v222, 2
        %v280 = vsel %vm246, %v278, %v279
        %v281 = vrot.slane %v223, 2
        %v282 = vsel %vm246, %v279, %v281
        %283 = vrot.lane.b32.xlu0 %v280, 127
        %v284 = vpop.permute.xlu0 %283
        %285 = vrot.lane.b32.xlu0 %v282, 127
        %v286 = vpop.permute.xlu0 %285
        %v289 = vadd.f32 %v276, %v284
        %v290 = vadd.f32 %v277, %v286
        %v291 = vadd.f32 %v289, %v257
        %v292 = vadd.f32 %v290, %v259
        %v293 = vmul.f32 %v291, 0.125
        %v294 = vmul.f32 %v292, 0.125
        %v295 = vmul.f32 %v264, %v264
        %v296 = vmul.f32 %v265, %v265
        %v297 = vmul.f32 %v293, %v293
        %v298 = vmul.f32 %v294, %v294
        %v299 = vadd.f32 %v295, %v297
        %v300 = vadd.f32 %v296, %v298
        %v301 = vrsqrt.pop %v299
        %v302 = vmul.f32 %v299, %v301
        %vm303 = vcmp.eq.f32.partialorder %v299, inf
        %v304 = vsel %vm303, %v299, %v302
        %vm305 = vcmp.eq.f32.partialorder %v299, 0.0
        %v306 = vand.u32 %v299, 2147483648
        %v307 = vsel %vm305, %v306, %v304
        %v308 = vrsqrt.pop %v300
        %v309 = vmul.f32 %v300, %v308
        %vm310 = vcmp.eq.f32.partialorder %v300, inf
        %v311 = vsel %vm310, %v300, %v309
        %vm312 = vcmp.eq.f32.partialorder %v300, 0.0
        %v313 = vand.u32 %v300, 2147483648
        %v314 = vsel %vm312, %v313, %v311
        %vm315 = vcmask 130048
        %316 = vst.msk [vmem:[%s150] sm:$0xff] %vm315, %v307
        %317 = vst.msk [vmem:[%s150 + $0x8] sm:$0xff] %vm315, %v314
        %s318 = sand.u32 %s72, 1
        %s319 = scalar_lea.sflag [#allocation3], %s318
        %s320 = sand.u32 %s72, 1
        %s321 = smul.addr %s320, 16
        %s322 = scalar_lea.vmem [#allocation5], %s321
        // Predicated region
        $region33: #{delta_depth_renderer_forward.3} parent=27 // pred_check
          %p323 = pneg %p82
        $region34: #{delta_depth_renderer_forward.3} parent=27 // pred_check_branch
          %325 = sbr.rel (%p323) target = $region36
        $region35: #{delta_depth_renderer_forward.3} parent=27 // pred_region
          %s327 = ssub.s32 256, 256
          %328 = vsyncadd %s319, %s327
          %s329 = smul.addr %s17, 2
          %s330 = smul.addr %s329, 128
          %s331 = scalar_lea.hbm %s2, %s330
          %s332 = sshll.u32 %s322, 4
          %s333 = int_to_ptr.vmem [resolvable:$true] %s332
          %338 = dma.vmem_to_hbm [thread:$0]  %s333, 256, %s331, %s319, 128, 128, 8
        $region36: #{delta_depth_renderer_forward.3} parent=27 // pred_fallthru
          _
      $region28: #{delta_depth_renderer_forward.3} parent=5 // pred_fallthru
        _
      %p339 = scmp.le.s32.totalorder 2, %s12
      // Predicated region
      $region37: #{delta_depth_renderer_forward.3} parent=5 // pred_check
        %p340 = pneg %p339
      $region38: #{delta_depth_renderer_forward.3} parent=5 // pred_check_branch
        %342 = sbr.rel (%p340) target = $region40
      $region39: #{delta_depth_renderer_forward.3} parent=5 // pred_region
        %s343 = ssub.s32 %s12, 2
        // Predicated region
        $region41: #{delta_depth_renderer_forward.3} parent=39 // pred_check
          %p344 = pneg %p88
        $region42: #{delta_depth_renderer_forward.3} parent=39 // pred_check_branch
          %346 = sbr.rel (%p344) target = $region44
        $region43: #{delta_depth_renderer_forward.3} parent=39 // pred_region
          %s347 = sand.u32 %s73, 1
          %s348 = scalar_lea.sflag [#allocation3], %s347
          %s349 = sand.u32 %s73, 1
          %s350 = smul.addr %s349, 16
          %s351 = scalar_lea.vmem [#allocation5], %s350
          %352 = dma.done %s348, 256
        $region44: #{delta_depth_renderer_forward.3} parent=39 // pred_fallthru
          _
      $region40: #{delta_depth_renderer_forward.3} parent=5 // pred_fallthru
        _
    $region6: #{delta_depth_renderer_forward.3} parent=1 // loop_footer
      %s16 = sadd.s32 1, %s12
    $region7: #{delta_depth_renderer_forward.3} parent=1 // loop_footer_branch
      %11 = sbr.rel target = $region3
    $region8: #{delta_depth_renderer_forward.3} parent=1 // loop_exit
      _
    %353 = vsyncpa [#allocation3], 1
    %s354 = scalar_lea.sflag [#allocation3], 1
    %355 = vsyncpa %s354, 1
    %356 = vsyncpa [#allocation4], 1
    %s357 = scalar_lea.sflag [#allocation4], 1
    %358 = vsyncpa %s357, 1

// kernel: delta_depth_renderer_forward.2
$region0: #{delta_depth_renderer_forward.2}
  #allocation0 [shape = 'u32[]', space=smem, size = 0x4, offset = 0x4, fixed_abs, tag = 'smem constant byte address 0x4 - core index']
  #allocation1 [shape = 'u32[144,128]{1,0:T(1,128)}', space=vmem, size = 0x12000, scoped, tag = 'internal scratch']
  %s0 = inlined_call_operand.hbm [shape: f32[512,64], index: 0, kind: input, shape index: {}]
  %s1 = inlined_call_operand.hbm [shape: f32[512,64], index: 1, kind: input, shape index: {}]
  %s2 = inlined_call_operand.hbm [shape: f32[512,64], index: 2, kind: input, shape index: {}]
  %s3 = inlined_call_operand.vmem [shape: f32[512,1], index: 3, kind: output, shape index: {}]
  %s4 = sld [smem:[#allocation0]]
  $region57: #{delta_depth_renderer_forward.2} parent=0
    _
  %s6 = ssub.s32 1, %s4
  %s7 = scalar_select 0, %s6, %s4
  $region1: #{delta_depth_renderer_forward.2} parent=0
    #allocation2 [shape = 'u8[262144]{0}', space=vmem, size = 0x40000, scoped, tag = 'input window, operand 0']
    #allocation3 [shape = 's32[2]{0}', space=sflag, size = 0x8, scoped, tag = 'scoped memory for delta_depth_renderer_forward.2']
    #allocation4 [shape = 'u8[262144]{0}', space=vmem, size = 0x40000, scoped, tag = 'input window, operand 1']
    #allocation5 [shape = 's32[2]{0}', space=sflag, size = 0x8, scoped, tag = 'scoped memory for delta_depth_renderer_forward.2']
    #allocation6 [shape = 'u8[262144]{0}', space=vmem, size = 0x40000, scoped, tag = 'input window, operand 2']
    %8 = vsyncpa [#allocation3], 0
    %s9 = scalar_lea.sflag [#allocation3], 1
    %10 = vsyncpa %s9, 0
    %11 = vsyncpa [#allocation5], 0
    %s12 = scalar_lea.sflag [#allocation5], 1
    %13 = vsyncpa %s12, 0
    loop: start=0, step=1, limit=4
    $region2: #{delta_depth_renderer_forward.2} parent=1 // loop_pre_header
      _
    $region3: #{delta_depth_renderer_forward.2} parent=1 // loop_header
      %s15 = sphi 0, %s19
      %p16 = scmp.ge.s32.totalorder %s15, 4
      %s25 = sphi 0, %s27
      %s28 = sphi 0, %s25
      %s29 = sphi 0, %s28
      %s45 = sphi 0, %s29
      %s51 = sphi 0, %s53
      %s54 = sphi 0, %s51
      %s55 = sphi 0, %s54
      %s71 = sphi 0, %s55
      %s77 = sphi 0, %s79
      %s80 = sphi 0, %s77
      %s81 = sphi 0, %s80
      %s97 = sphi 0, %s81
      %s103 = sphi 0, %s105
      %s106 = sphi 0, %s103
      %s107 = sphi 0, %s106
      %s123 = sphi 0, %s107
    $region4: #{delta_depth_renderer_forward.2} parent=1 // loop_header_branch
      %18 = sbr.rel (%p16) target = $region8
    $region5: #{delta_depth_renderer_forward.2} parent=1 // loop_body
      %s20 = ssub.s32 %s15, 1
      %s21 = ssub.s32 %s15, 2
      %s22 = sadd.s32 %s15, 1
      %s23 = ssub.s32 %s15, %s22
      %p24 = scmp.eq.s32.totalorder %s23, 0
      %s26 = sadd.s32 %s25, 1
      %s27 = scalar_select %p24, %s25, %s26
      %p30 = pneg %p24
      %p31 = scmp.eq.s32.totalorder %s15, 1
      %p32 = por %p30, %p31
      %p33 = scmp.ne.s32.totalorder %s25, %s28
      %p34 = scmp.eq.s32.totalorder %s15, 0
      %p35 = por %p33, %p34
      %p36 = scmp.ne.s32.totalorder %s25, %s28
      %p37 = scmp.eq.s32.totalorder %s20, 1
      %p38 = por %p36, %p37
      %p39 = scmp.ne.s32.totalorder %s28, %s29
      %p40 = scmp.eq.s32.totalorder %s20, 0
      %p41 = por %p39, %p40
      %p42 = scmp.ne.s32.totalorder %s28, %s29
      %p43 = scmp.eq.s32.totalorder %s21, 1
      %p44 = por %p42, %p43
      %p46 = scmp.ne.s32.totalorder %s29, %s45
      %p47 = scmp.eq.s32.totalorder %s21, 0
      %p48 = por %p46, %p47
      %s49 = ssub.s32 %s15, %s22
      %p50 = scmp.eq.s32.totalorder %s49, 0
      %s52 = sadd.s32 %s51, 1
      %s53 = scalar_select %p50, %s51, %s52
      %p56 = pneg %p50
      %p57 = scmp.eq.s32.totalorder %s15, 1
      %p58 = por %p56, %p57
      %p59 = scmp.ne.s32.totalorder %s51, %s54
      %p60 = scmp.eq.s32.totalorder %s15, 0
      %p61 = por %p59, %p60
      %p62 = scmp.ne.s32.totalorder %s51, %s54
      %p63 = scmp.eq.s32.totalorder %s20, 1
      %p64 = por %p62, %p63
      %p65 = scmp.ne.s32.totalorder %s54, %s55
      %p66 = scmp.eq.s32.totalorder %s20, 0
      %p67 = por %p65, %p66
      %p68 = scmp.ne.s32.totalorder %s54, %s55
      %p69 = scmp.eq.s32.totalorder %s21, 1
      %p70 = por %p68, %p69
      %p72 = scmp.ne.s32.totalorder %s55, %s71
      %p73 = scmp.eq.s32.totalorder %s21, 0
      %p74 = por %p72, %p73
      %s75 = ssub.s32 %s15, %s22
      %p76 = scmp.eq.s32.totalorder %s75, 0
      %s78 = sadd.s32 %s77, 1
      %s79 = scalar_select %p76, %s77, %s78
      %p82 = pneg %p76
      %p83 = scmp.eq.s32.totalorder %s15, 1
      %p84 = por %p82, %p83
      %p85 = scmp.ne.s32.totalorder %s77, %s80
      %p86 = scmp.eq.s32.totalorder %s15, 0
      %p87 = por %p85, %p86
      %p88 = scmp.ne.s32.totalorder %s77, %s80
      %p89 = scmp.eq.s32.totalorder %s20, 1
      %p90 = por %p88, %p89
      %p91 = scmp.ne.s32.totalorder %s80, %s81
      %p92 = scmp.eq.s32.totalorder %s20, 0
      %p93 = por %p91, %p92
      %p94 = scmp.ne.s32.totalorder %s80, %s81
      %p95 = scmp.eq.s32.totalorder %s21, 1
      %p96 = por %p94, %p95
      %p98 = scmp.ne.s32.totalorder %s81, %s97
      %p99 = scmp.eq.s32.totalorder %s21, 0
      %p100 = por %p98, %p99
      %s101 = ssub.s32 %s15, %s22
      %p102 = scmp.eq.s32.totalorder %s101, 0
      %s104 = sadd.s32 %s103, 1
      %s105 = scalar_select %p102, %s103, %s104
      %p108 = pneg %p102
      %p109 = scmp.eq.s32.totalorder %s15, 1
      %p110 = por %p108, %p109
      %p111 = scmp.ne.s32.totalorder %s103, %s106
      %p112 = scmp.eq.s32.totalorder %s15, 0
      %p113 = por %p111, %p112
      %p114 = scmp.ne.s32.totalorder %s103, %s106
      %p115 = scmp.eq.s32.totalorder %s20, 1
      %p116 = por %p114, %p115
      %p117 = scmp.ne.s32.totalorder %s106, %s107
      %p118 = scmp.eq.s32.totalorder %s20, 0
      %p119 = por %p117, %p118
      %p120 = scmp.ne.s32.totalorder %s106, %s107
      %p121 = scmp.eq.s32.totalorder %s21, 1
      %p122 = por %p120, %p121
      %p124 = scmp.ne.s32.totalorder %s107, %s123
      %p125 = scmp.eq.s32.totalorder %s21, 0
      %p126 = por %p124, %p125
      %p127 = scmp.le.s32.totalorder 1, %s15
      %p128 = scmp.lt.s32.totalorder %s15, 3
      %p129 = pnand %p127, %p128
      %p130 = pneg %p129
      // Predicated region
      $region9: #{delta_depth_renderer_forward.2} parent=5 // pred_check
        _
      $region10: #{delta_depth_renderer_forward.2} parent=5 // pred_check_branch
        %132 = sbr.rel (%p129) target = $region12
      $region11: #{delta_depth_renderer_forward.2} parent=5 // pred_region
        %s133 = ssub.s32 %s15, 1
      $region12: #{delta_depth_renderer_forward.2} parent=5 // pred_fallthru
        _
      %p134 = scmp.lt.s32.totalorder %s15, 2
      // Predicated region
      $region13: #{delta_depth_renderer_forward.2} parent=5 // pred_check
        %p135 = pneg %p134
      $region14: #{delta_depth_renderer_forward.2} parent=5 // pred_check_branch
        %137 = sbr.rel (%p135) target = $region16
      $region15: #{delta_depth_renderer_forward.2} parent=5 // pred_region
        // Predicated region
        $region17: #{delta_depth_renderer_forward.2} parent=15 // pred_check
          %p138 = pneg %p35
        $region18: #{delta_depth_renderer_forward.2} parent=15 // pred_check_branch
          %140 = sbr.rel (%p138) target = $region20
        $region19: #{delta_depth_renderer_forward.2} parent=15 // pred_region
          %s141 = sand.u32 %s25, 1
          %s142 = scalar_lea.sflag [#allocation3], %s141
          %s143 = sand.u32 %s25, 1
          %s144 = smul.addr %s143, 256
          %s145 = scalar_lea.vmem [#allocation2], %s144
          %s146 = smul.u32 32, %s15
          %s148 = ssub.s32 4096, 4096
          %149 = vsyncadd %s142, %s148
          %s150 = smul.addr %s146, 128
          %s151 = scalar_lea.hbm %s0, %s150
          %s152 = sshll.u32 %s145, 4
          %s153 = int_to_ptr.vmem [resolvable:$true] %s152
          %158 = dma.hbm_to_vmem [thread:$0]  %s151, 4096, %s153, %s142, 128, 128, 8
        $region20: #{delta_depth_renderer_forward.2} parent=15 // pred_fallthru
          _
        // Predicated region
        $region21: #{delta_depth_renderer_forward.2} parent=15 // pred_check
          %p159 = pneg %p61
        $region22: #{delta_depth_renderer_forward.2} parent=15 // pred_check_branch
          %161 = sbr.rel (%p159) target = $region24
        $region23: #{delta_depth_renderer_forward.2} parent=15 // pred_region
          %s162 = sand.u32 %s15, 1
          %s163 = scalar_lea.sflag [#allocation5], %s162
          %s164 = sand.u32 %s51, 1
          %s165 = smul.addr %s164, 256
          %s166 = scalar_lea.vmem [#allocation4], %s165
          %s167 = smul.u32 32, %s15
          %s169 = ssub.s32 4096, 4096
          %170 = vsyncadd %s163, %s169
          %s171 = smul.addr %s167, 128
          %s172 = scalar_lea.hbm %s1, %s171
          %s173 = sshll.u32 %s166, 4
          %s174 = int_to_ptr.vmem [resolvable:$true] %s173
          %179 = dma.hbm_to_vmem [thread:$0]  %s172, 4096, %s174, %s163, 128, 128, 8
        $region24: #{delta_depth_renderer_forward.2} parent=15 // pred_fallthru
          _
        // Predicated region
        $region25: #{delta_depth_renderer_forward.2} parent=15 // pred_check
          %p180 = pneg %p87
        $region26: #{delta_depth_renderer_forward.2} parent=15 // pred_check_branch
          %182 = sbr.rel (%p180) target = $region28
        $region27: #{delta_depth_renderer_forward.2} parent=15 // pred_region
          %s183 = sand.u32 %s15, 1
          %s184 = scalar_lea.sflag [#allocation5], %s183
          %s185 = sand.u32 %s77, 1
          %s186 = smul.addr %s185, 256
          %s187 = scalar_lea.vmem [#allocation6], %s186
          %s188 = smul.u32 32, %s15
          %s190 = ssub.s32 4096, 4096
          %191 = vsyncadd %s184, %s190
          %s192 = smul.addr %s188, 128
          %s193 = scalar_lea.hbm %s2, %s192
          %s194 = sshll.u32 %s187, 4
          %s195 = int_to_ptr.vmem [resolvable:$true] %s194
          %200 = dma.hbm_to_vmem [thread:$0]  %s193, 4096, %s195, %s184, 128, 128, 8
        $region28: #{delta_depth_renderer_forward.2} parent=15 // pred_fallthru
          _
      $region16: #{delta_depth_renderer_forward.2} parent=5 // pred_fallthru
        _
      %p201 = scmp.le.s32.totalorder 1, %s15
      %p202 = scmp.lt.s32.totalorder %s15, 3
      %p203 = pnand %p201, %p202
      %p204 = pneg %p203
      // Predicated region
      $region29: #{delta_depth_renderer_forward.2} parent=5 // pred_check
        _
      $region30: #{delta_depth_renderer_forward.2} parent=5 // pred_check_branch
        %206 = sbr.rel (%p203) target = $region32
      $region31: #{delta_depth_renderer_forward.2} parent=5 // pred_region
        %s207 = ssub.s32 %s15, 1
        %s208 = sand.u32 %s28, 1
        %s209 = scalar_lea.sflag [#allocation3], %s208
        %s210 = sand.u32 %s28, 1
        %s211 = smul.addr %s210, 256
        %s212 = scalar_lea.vmem [#allocation2], %s211
        // Predicated region
        $region33: #{delta_depth_renderer_forward.2} parent=31 // pred_check
          %p213 = pneg %p41
        $region34: #{delta_depth_renderer_forward.2} parent=31 // pred_check_branch
          %215 = sbr.rel (%p213) target = $region36
        $region35: #{delta_depth_renderer_forward.2} parent=31 // pred_region
          %216 = dma.done %s209, 4096
        $region36: #{delta_depth_renderer_forward.2} parent=31 // pred_fallthru
          _
        %s217 = sand.u32 %s20, 1
        %s218 = scalar_lea.sflag [#allocation5], %s217
        %s219 = sand.u32 %s54, 1
        %s220 = smul.addr %s219, 256
        %s221 = scalar_lea.vmem [#allocation4], %s220
        // Predicated region
        $region37: #{delta_depth_renderer_forward.2} parent=31 // pred_check
          %p222 = pneg %p67
        $region38: #{delta_depth_renderer_forward.2} parent=31 // pred_check_branch
          %224 = sbr.rel (%p222) target = $region40
        $region39: #{delta_depth_renderer_forward.2} parent=31 // pred_region
          %225 = dma.done %s218, 4096
        $region40: #{delta_depth_renderer_forward.2} parent=31 // pred_fallthru
          _
        %s226 = sand.u32 %s20, 1
        %s227 = scalar_lea.sflag [#allocation5], %s226
        %s228 = sand.u32 %s80, 1
        %s229 = smul.addr %s228, 256
        %s230 = scalar_lea.vmem [#allocation6], %s229
        // Predicated region
        $region41: #{delta_depth_renderer_forward.2} parent=31 // pred_check
          %p231 = pneg %p93
        $region42: #{delta_depth_renderer_forward.2} parent=31 // pred_check_branch
          %233 = sbr.rel (%p231) target = $region44
        $region43: #{delta_depth_renderer_forward.2} parent=31 // pred_region
          %234 = dma.done %s227, 4096
        $region44: #{delta_depth_renderer_forward.2} parent=31 // pred_fallthru
          _
        %s235 = sand.u32 %s28, 1
        %s236 = scalar_lea.sflag [#allocation3], %s235
        %s237 = sand.u32 %s28, 1
        %s238 = smul.addr %s237, 256
        %s239 = scalar_lea.vmem [#allocation2], %s238
        %p240 = pneg %p41
        %p241 = pneg %p38
        %s242 = sand.u32 %s20, 1
        %s243 = scalar_lea.sflag [#allocation5], %s242
        %s244 = sand.u32 %s54, 1
        %s245 = smul.addr %s244, 256
        %s246 = scalar_lea.vmem [#allocation4], %s245
        %p247 = pneg %p67
        %p248 = pneg %p64
        %s249 = sand.u32 %s20, 1
        %s250 = scalar_lea.sflag [#allocation5], %s249
        %s251 = sand.u32 %s80, 1
        %s252 = smul.addr %s251, 256
        %s253 = scalar_lea.vmem [#allocation6], %s252
        %p254 = pneg %p93
        %p255 = pneg %p90
        %p256 = pneg %p119
        %p257 = pneg %p116
        %s258 = smul.u32 32, %s20
        %p259 = scmp.lt.s32.totalorder %s258, 63
        %s260 = scalar_select %p259, %s258, 63
        %s261 = smul.addr %s260, 8
        %s262 = scalar_lea.vmem %s3, %s261
        %s263 = smul.u32 32, %s20
        %s264 = smul.u32 32, %s20
        %s265 = smul.u32 32, %s20
        %s266 = smul.u32 32, %s20
        %p267 = scmp.lt.s32.totalorder %s266, 63
        %s268 = scalar_select %p267, %s266, 63
        %s269 = smul.addr %s268, 8
        %s270 = scalar_lea.vmem %s3, %s269
        %s271 = smul.u32 32, %s20
        %v272 = vld [vmem:[%s212] sm:$0xff]
        %v273 = vld [vmem:[%s212 + $0x8] sm:$0xff]
        %v274 = vld [vmem:[%s212 + $0x10] sm:$0xff]
        %v275 = vld [vmem:[%s212 + $0x18] sm:$0xff]
        %v276 = vld [vmem:[%s212 + $0x20] sm:$0xff]
        %v277 = vld [vmem:[%s212 + $0x28] sm:$0xff]
        %v278 = vld [vmem:[%s212 + $0x30] sm:$0xff]
        %v279 = vld [vmem:[%s212 + $0x38] sm:$0xff]
        %v280 = vld [vmem:[%s212 + $0x40] sm:$0xff]
        %v281 = vld [vmem:[%s212 + $0x48] sm:$0xff]
        %v282 = vld [vmem:[%s212 + $0x50] sm:$0xff]
        %v283 = vld [vmem:[%s212 + $0x58] sm:$0xff]
        %v284 = vld [vmem:[%s212 + $0x60] sm:$0xff]
        %v285 = vld [vmem:[%s212 + $0x68] sm:$0xff]
        %v286 = vld [vmem:[%s212 + $0x70] sm:$0xff]
        %v287 = vld [vmem:[%s212 + $0x78] sm:$0xff]
        %v288 = vld [vmem:[%s212 + $0x80] sm:$0xff]
        %v289 = vld [vmem:[%s212 + $0x88] sm:$0xff]
        %v290 = vld [vmem:[%s212 + $0x90] sm:$0xff]
        %v291 = vld [vmem:[%s212 + $0x98] sm:$0xff]
        %v292 = vld [vmem:[%s212 + $0xa0] sm:$0xff]
        %v293 = vld [vmem:[%s212 + $0xa8] sm:$0xff]
        %v294 = vld [vmem:[%s212 + $0xb0] sm:$0xff]
        %v295 = vld [vmem:[%s212 + $0xb8] sm:$0xff]
        %v296 = vld [vmem:[%s212 + $0xc0] sm:$0xff]
        %v297 = vld [vmem:[%s212 + $0xc8] sm:$0xff]
        %v298 = vld [vmem:[%s212 + $0xd0] sm:$0xff]
        %v299 = vld [vmem:[%s212 + $0xd8] sm:$0xff]
        %v300 = vld [vmem:[%s212 + $0xe0] sm:$0xff]
        %v301 = vld [vmem:[%s212 + $0xe8] sm:$0xff]
        %v302 = vld [vmem:[%s212 + $0xf0] sm:$0xff]
        %v303 = vld [vmem:[%s212 + $0xf8] sm:$0xff]
        %v304 = vld [vmem:[%s221] sm:$0xff]
        %v305 = vld [vmem:[%s221 + $0x8] sm:$0xff]
        %v306 = vld [vmem:[%s221 + $0x10] sm:$0xff]
        %v307 = vld [vmem:[%s221 + $0x18] sm:$0xff]
        %v308 = vld [vmem:[%s221 + $0x20] sm:$0xff]
        %v309 = vld [vmem:[%s221 + $0x28] sm:$0xff]
        %v310 = vld [vmem:[%s221 + $0x30] sm:$0xff]
        %v311 = vld [vmem:[%s221 + $0x38] sm:$0xff]
        %v312 = vld [vmem:[%s221 + $0x40] sm:$0xff]
        %v313 = vld [vmem:[%s221 + $0x48] sm:$0xff]
        %v314 = vld [vmem:[%s221 + $0x50] sm:$0xff]
        %v315 = vld [vmem:[%s221 + $0x58] sm:$0xff]
        %v316 = vld [vmem:[%s221 + $0x60] sm:$0xff]
        %v317 = vld [vmem:[%s221 + $0x68] sm:$0xff]
        %v318 = vld [vmem:[%s221 + $0x70] sm:$0xff]
        %v319 = vld [vmem:[%s221 + $0x78] sm:$0xff]
        %v320 = vld [vmem:[%s221 + $0x80] sm:$0xff]
        %v321 = vld [vmem:[%s221 + $0x88] sm:$0xff]
        %v322 = vld [vmem:[%s221 + $0x90] sm:$0xff]
        %v323 = vld [vmem:[%s221 + $0x98] sm:$0xff]
        %v324 = vld [vmem:[%s221 + $0xa0] sm:$0xff]
        %v325 = vld [vmem:[%s221 + $0xa8] sm:$0xff]
        %v326 = vld [vmem:[%s221 + $0xb0] sm:$0xff]
        %v327 = vld [vmem:[%s221 + $0xb8] sm:$0xff]
        %v328 = vld [vmem:[%s221 + $0xc0] sm:$0xff]
        %v329 = vld [vmem:[%s221 + $0xc8] sm:$0xff]
        %v330 = vld [vmem:[%s221 + $0xd0] sm:$0xff]
        %v331 = vld [vmem:[%s221 + $0xd8] sm:$0xff]
        %v332 = vld [vmem:[%s221 + $0xe0] sm:$0xff]
        %v333 = vld [vmem:[%s221 + $0xe8] sm:$0xff]
        %v334 = vld [vmem:[%s221 + $0xf0] sm:$0xff]
        %v335 = vld [vmem:[%s221 + $0xf8] sm:$0xff]
        %v336 = vld [vmem:[%s230] sm:$0xff]
        %v337 = vld [vmem:[%s230 + $0x8] sm:$0xff]
        %v338 = vld [vmem:[%s230 + $0x10] sm:$0xff]
        %v339 = vld [vmem:[%s230 + $0x18] sm:$0xff]
        %v340 = vld [vmem:[%s230 + $0x20] sm:$0xff]
        %v341 = vld [vmem:[%s230 + $0x28] sm:$0xff]
        %v342 = vld [vmem:[%s230 + $0x30] sm:$0xff]
        %v343 = vld [vmem:[%s230 + $0x38] sm:$0xff]
        %v344 = vld [vmem:[%s230 + $0x40] sm:$0xff]
        %v345 = vld [vmem:[%s230 + $0x48] sm:$0xff]
        %v346 = vld [vmem:[%s230 + $0x50] sm:$0xff]
        %v347 = vld [vmem:[%s230 + $0x58] sm:$0xff]
        %v348 = vld [vmem:[%s230 + $0x60] sm:$0xff]
        %v349 = vld [vmem:[%s230 + $0x68] sm:$0xff]
        %v350 = vld [vmem:[%s230 + $0x70] sm:$0xff]
        %v351 = vld [vmem:[%s230 + $0x78] sm:$0xff]
        %v352 = vld [vmem:[%s230 + $0x80] sm:$0xff]
        %v353 = vld [vmem:[%s230 + $0x88] sm:$0xff]
        %v354 = vld [vmem:[%s230 + $0x90] sm:$0xff]
        %v355 = vld [vmem:[%s230 + $0x98] sm:$0xff]
        %v356 = vld [vmem:[%s230 + $0xa0] sm:$0xff]
        %v357 = vld [vmem:[%s230 + $0xa8] sm:$0xff]
        %v358 = vld [vmem:[%s230 + $0xb0] sm:$0xff]
        %v359 = vld [vmem:[%s230 + $0xb8] sm:$0xff]
        %v360 = vld [vmem:[%s230 + $0xc0] sm:$0xff]
        %v361 = vld [vmem:[%s230 + $0xc8] sm:$0xff]
        %v362 = vld [vmem:[%s230 + $0xd0] sm:$0xff]
        %v363 = vld [vmem:[%s230 + $0xd8] sm:$0xff]
        %v364 = vld [vmem:[%s230 + $0xe0] sm:$0xff]
        %v365 = vld [vmem:[%s230 + $0xe8] sm:$0xff]
        %v366 = vld [vmem:[%s230 + $0xf0] sm:$0xff]
        %v367 = vld [vmem:[%s230 + $0xf8] sm:$0xff]
        %v368 = vadd.f32 %v304, %v336
        %v369 = vadd.f32 %v305, %v337
        %v370 = vadd.f32 %v306, %v338
        %v371 = vadd.f32 %v307, %v339
        %v372 = vadd.f32 %v308, %v340
        %v373 = vadd.f32 %v309, %v341
        %v374 = vadd.f32 %v310, %v342
        %v375 = vadd.f32 %v311, %v343
        %v376 = vadd.f32 %v312, %v344
        %v377 = vadd.f32 %v313, %v345
        %v378 = vadd.f32 %v314, %v346
        %v379 = vadd.f32 %v315, %v347
        %v380 = vadd.f32 %v316, %v348
        %v381 = vadd.f32 %v317, %v349
        %v382 = vadd.f32 %v318, %v350
        %v383 = vadd.f32 %v319, %v351
        %v384 = vadd.f32 %v320, %v352
        %v385 = vadd.f32 %v321, %v353
        %v386 = vadd.f32 %v322, %v354
        %v387 = vadd.f32 %v323, %v355
        %v388 = vadd.f32 %v324, %v356
        %v389 = vadd.f32 %v325, %v357
        %v390 = vadd.f32 %v326, %v358
        %v391 = vadd.f32 %v327, %v359
        %v392 = vadd.f32 %v328, %v360
        %v393 = vadd.f32 %v329, %v361
        %v394 = vadd.f32 %v330, %v362
        %v395 = vadd.f32 %v331, %v363
        %v396 = vadd.f32 %v332, %v364
        %v397 = vadd.f32 %v333, %v365
        %v398 = vadd.f32 %v334, %v366
        %v399 = vadd.f32 %v335, %v367
        %v400 = vmul.f32 %v368, 0.5
        %v401 = vmul.f32 %v369, 0.5
        %v402 = vmul.f32 %v370, 0.5
        %v403 = vmul.f32 %v371, 0.5
        %v404 = vmul.f32 %v372, 0.5
        %v405 = vmul.f32 %v373, 0.5
        %v406 = vmul.f32 %v374, 0.5
        %v407 = vmul.f32 %v375, 0.5
        %v408 = vmul.f32 %v376, 0.5
        %v409 = vmul.f32 %v377, 0.5
        %v410 = vmul.f32 %v378, 0.5
        %v411 = vmul.f32 %v379, 0.5
        %v412 = vmul.f32 %v380, 0.5
        %v413 = vmul.f32 %v381, 0.5
        %v414 = vmul.f32 %v382, 0.5
        %v415 = vmul.f32 %v383, 0.5
        %v416 = vmul.f32 %v384, 0.5
        %v417 = vmul.f32 %v385, 0.5
        %v418 = vmul.f32 %v386, 0.5
        %v419 = vmul.f32 %v387, 0.5
        %v420 = vmul.f32 %v388, 0.5
        %v421 = vmul.f32 %v389, 0.5
        %v422 = vmul.f32 %v390, 0.5
        %v423 = vmul.f32 %v391, 0.5
        %v424 = vmul.f32 %v392, 0.5
        %v425 = vmul.f32 %v393, 0.5
        %v426 = vmul.f32 %v394, 0.5
        %v427 = vmul.f32 %v395, 0.5
        %v428 = vmul.f32 %v396, 0.5
        %v429 = vmul.f32 %v397, 0.5
        %v430 = vmul.f32 %v398, 0.5
        %v431 = vmul.f32 %v399, 0.5
        %v432 = vlaneseq
        %v433 = vshrl.u32 %v432, 7
        %v434 = vadd.s32 %v433, 8
        %v435 = vadd.s32 %v433, 16
        %v436 = vadd.s32 %v433, 24
        %v437 = vadd.s32 %v433, 32
        %v438 = vadd.s32 %v433, 40
        %v439 = vadd.s32 %v433, 48
        %v440 = vadd.s32 %v433, 56
        %v441 = vlaneseq
        %v442 = vand.u32 %v441, 127
        %vm443 = vcmp.le.s32.totalorder %v433, %v442
        %vm444 = vcmp.le.s32.totalorder %v434, %v442
        %vm445 = vcmp.le.s32.totalorder %v435, %v442
        %vm446 = vcmp.le.s32.totalorder %v436, %v442
        %vm447 = vcmp.le.s32.totalorder %v437, %v442
        %vm448 = vcmp.le.s32.totalorder %v438, %v442
        %vm449 = vcmp.le.s32.totalorder %v439, %v442
        %vm450 = vcmp.le.s32.totalorder %v440, %v442
        %v451 = vsel %vm443, 1, 0
        %v452 = vsel %vm444, 1, 0
        %v453 = vsel %vm445, 1, 0
        %v454 = vsel %vm446, 1, 0
        %v455 = vsel %vm447, 1, 0
        %v456 = vsel %vm448, 1, 0
        %v457 = vsel %vm449, 1, 0
        %v458 = vsel %vm450, 1, 0
        %v459 = vcvt.s32.f32 %v451
        %v460 = vcvt.s32.f32 %v452
        %v461 = vcvt.s32.f32 %v453
        %v462 = vcvt.s32.f32 %v454
        %v463 = vcvt.s32.f32 %v455
        %v464 = vcvt.s32.f32 %v456
        %v465 = vcvt.s32.f32 %v457
        %v466 = vcvt.s32.f32 %v458
        %vm467 = vcmask 523264
        %v469 = vsel %vm467, %v272, 0
        %v472 = vsel %vm467, %v273, 0
        %v475 = vsel %vm467, %v274, 0
        %v478 = vsel %vm467, %v275, 0
        %v481 = vsel %vm467, %v276, 0
        %v484 = vsel %vm467, %v277, 0
        %v487 = vsel %vm467, %v278, 0
        %v490 = vsel %vm467, %v279, 0
        %v493 = vsel %vm467, %v280, 0
        %v496 = vsel %vm467, %v281, 0
        %v499 = vsel %vm467, %v282, 0
        %v502 = vsel %vm467, %v283, 0
        %v505 = vsel %vm467, %v284, 0
        %v508 = vsel %vm467, %v285, 0
        %v511 = vsel %vm467, %v286, 0
        %v514 = vsel %vm467, %v287, 0
        %v517 = vsel %vm467, %v288, 0
        %v520 = vsel %vm467, %v289, 0
        %v523 = vsel %vm467, %v290, 0
        %v526 = vsel %vm467, %v291, 0
        %v529 = vsel %vm467, %v292, 0
        %v532 = vsel %vm467, %v293, 0
        %v535 = vsel %vm467, %v294, 0
        %v538 = vsel %vm467, %v295, 0
        %v541 = vsel %vm467, %v296, 0
        %v544 = vsel %vm467, %v297, 0
        %v547 = vsel %vm467, %v298, 0
        %v550 = vsel %vm467, %v299, 0
        %v553 = vsel %vm467, %v300, 0
        %v556 = vsel %vm467, %v301, 0
        %v559 = vsel %vm467, %v302, 0
        %v562 = vsel %vm467, %v303, 0
        %564 = vmatprep.subr.mxu0 0.0
        %565 = vmatpush1.msra.mxu0 %v459
        %566 = vmatprep.subr.mxu0 0.0
        %567 = vmatpush1.msra.mxu0 %v460
        %568 = vmatprep.subr.mxu0 0.0
        %569 = vmatpush1.msra.mxu0 %v461
        %570 = vmatprep.subr.mxu0 0.0
        %571 = vmatpush1.msra.mxu0 %v462
        %572 = vmatprep.subr.mxu0 0.0
        %573 = vmatpush1.msra.mxu0 %v463
        %574 = vmatprep.subr.mxu0 0.0
        %575 = vmatpush1.msra.mxu0 %v464
        %576 = vmatprep.subr.mxu0 0.0
        %577 = vmatpush1.msra.mxu0 %v465
        %578 = vmatprep.subr.mxu0 0.0
        %579 = vmatpush1.msra.mxu0 %v466
        %580 = vmatprep.subr.mxu0 0.0
        %581 = vmatpush1.msra.mxu0 0.0
        %582 = vmatprep.subr.mxu0 0.0
        %583 = vmatpush1.msra.mxu0 0.0
        %584 = vmatprep.subr.mxu0 0.0
        %585 = vmatpush1.msra.mxu0 0.0
        %586 = vmatprep.subr.mxu0 0.0
        %587 = vmatpush1.msra.mxu0 0.0
        %588 = vmatprep.subr.mxu0 0.0
        %589 = vmatpush1.msra.mxu0 0.0
        %590 = vmatprep.subr.mxu0 0.0
        %591 = vmatpush1.msra.mxu0 0.0
        %592 = vmatprep.subr.mxu0 0.0
        %593 = vmatpush1.msra.mxu0 0.0
        %594 = vmatprep.subr.mxu0 0.0
        %595 = vmatpush1.msra.mxu0 0.0
        %596 = vmatprep.subr.mxu0 0.0
        %597 = vmatpush1.msra.mxu0 0.0
        %598 = vmatprep.subr.mxu0 0.0
        %599 = vmatpush1.msra.mxu0 0.0
        %600 = vmatprep.subr.mxu0 0.0
        %601 = vmatpush1.msra.mxu0 0.0
        %602 = vmatprep.subr.mxu0 0.0
        %603 = vmatpush1.msra.mxu0 0.0
        %604 = vmatprep.subr.mxu0 0.0
        %605 = vmatpush1.msra.mxu0 0.0
        %606 = vmatprep.subr.mxu0 0.0
        %607 = vmatpush1.msra.mxu0 0.0
        %608 = vmatprep.subr.mxu0 0.0
        %609 = vmatpush1.msra.mxu0 0.0
        %610 = vmatprep.subr.mxu0 0.0
        %611 = vmatpush1.msra.mxu0 0.0
        %612 = vmatprep.subr.mxu0 0.0
        %613 = vmatpush1.msra.mxu0 0.0
        %614 = vmatprep.subr.mxu0 0.0
        %615 = vmatpush1.msra.mxu0 0.0
        %616 = vmatprep.subr.mxu0 0.0
        %617 = vmatpush1.msra.mxu0 0.0
        %618 = vmatprep.subr.mxu0 0.0
        %619 = vmatpush1.msra.mxu0 0.0
        %620 = vmatprep.subr.mxu0 0.0
        %621 = vmatpush1.msra.mxu0 0.0
        %622 = vmatprep.subr.mxu0 0.0
        %623 = vmatpush1.msra.mxu0 0.0
        %624 = vmatprep.subr.mxu0 0.0
        %625 = vmatpush1.msra.mxu0 0.0
        %626 = vmatprep.subr.mxu0 0.0
        %627 = vmatpush1.msra.mxu0 0.0
        %628 = vmatprep.mubr.f32.mxu0 0.0
        %629 = vmatmul.mubr.f32.gmra.mrb[0].mxu0 %v469
        %v630 = vpop.f32.mrb[0].mxu0
        %v631 = vadd.f32 0.0, %v630
        %v632 = vpop.f32.mrb[0].mxu0
        %633 = vmatprep.mubr.f32.mxu0 0.0
        %634 = vmatmul.mubr.f32.gmra.mrb[0].mxu0 %v472
        %v635 = vpop.f32.mrb[0].mxu0
        %v636 = vadd.f32 0.0, %v635
        %v637 = vpop.f32.mrb[0].mxu0
        %638 = vmatprep.mubr.f32.mxu0 0.0
        %639 = vmatmul.mubr.f32.gmra.mrb[0].mxu0 %v475
        %v640 = vpop.f32.mrb[0].mxu0
        %v641 = vadd.f32 0.0, %v640
        %v642 = vpop.f32.mrb[0].mxu0
        %643 = vmatprep.mubr.f32.mxu0 0.0
        %644 = vmatmul.mubr.f32.gmra.mrb[0].mxu0 %v478
        %v645 = vpop.f32.mrb[0].mxu0
        %v646 = vadd.f32 0.0, %v645
        %v647 = vpop.f32.mrb[0].mxu0
        %648 = vmatprep.mubr.f32.mxu0 0.0
        %649 = vmatmul.mubr.f32.gmra.mrb[0].mxu0 %v481
        %v650 = vpop.f32.mrb[0].mxu0
        %v651 = vadd.f32 0.0, %v650
        %v652 = vpop.f32.mrb[0].mxu0
        %653 = vmatprep.mubr.f32.mxu0 0.0
        %654 = vmatmul.mubr.f32.gmra.mrb[0].mxu0 %v484
        %v655 = vpop.f32.mrb[0].mxu0
        %v656 = vadd.f32 0.0, %v655
        %v657 = vpop.f32.mrb[0].mxu0
        %658 = vmatprep.mubr.f32.mxu0 0.0
        %659 = vmatmul.mubr.f32.gmra.mrb[0].mxu0 %v487
        %v660 = vpop.f32.mrb[0].mxu0
        %v661 = vadd.f32 0.0, %v660
        %v662 = vpop.f32.mrb[0].mxu0
        %663 = vmatprep.mubr.f32.mxu0 0.0
        %664 = vmatmul.mubr.f32.gmra.mrb[0].mxu0 %v490
        %v665 = vpop.f32.mrb[0].mxu0
        %v666 = vadd.f32 0.0, %v665
        %v667 = vpop.f32.mrb[0].mxu0
        %668 = vmatprep.mubr.f32.mxu0 0.0
        %669 = vmatmul.mubr.f32.gmra.mrb[0].mxu0 %v493
        %v670 = vpop.f32.mrb[0].mxu0
        %v671 = vadd.f32 0.0, %v670
        %v672 = vpop.f32.mrb[0].mxu0
        %673 = vmatprep.mubr.f32.mxu0 0.0
        %674 = vmatmul.mubr.f32.gmra.mrb[0].mxu0 %v496
        %v675 = vpop.f32.mrb[0].mxu0
        %v676 = vadd.f32 0.0, %v675
        %v677 = vpop.f32.mrb[0].mxu0
        %678 = vmatprep.mubr.f32.mxu0 0.0
        %679 = vmatmul.mubr.f32.gmra.mrb[0].mxu0 %v499
        %v680 = vpop.f32.mrb[0].mxu0
        %v681 = vadd.f32 0.0, %v680
        %v682 = vpop.f32.mrb[0].mxu0
        %683 = vmatprep.mubr.f32.mxu0 0.0
        %684 = vmatmul.mubr.f32.gmra.mrb[0].mxu0 %v502
        %v685 = vpop.f32.mrb[0].mxu0
        %v686 = vadd.f32 0.0, %v685
        %v687 = vpop.f32.mrb[0].mxu0
        %688 = vmatprep.mubr.f32.mxu0 0.0
        %689 = vmatmul.mubr.f32.gmra.mrb[0].mxu0 %v505
        %v690 = vpop.f32.mrb[0].mxu0
        %v691 = vadd.f32 0.0, %v690
        %v692 = vpop.f32.mrb[0].mxu0
        %693 = vmatprep.mubr.f32.mxu0 0.0
        %694 = vmatmul.mubr.f32.gmra.mrb[0].mxu0 %v508
        %v695 = vpop.f32.mrb[0].mxu0
        %v696 = vadd.f32 0.0, %v695
        %v697 = vpop.f32.mrb[0].mxu0
        %698 = vmatprep.mubr.f32.mxu0 0.0
        %699 = vmatmul.mubr.f32.gmra.mrb[0].mxu0 %v511
        %v700 = vpop.f32.mrb[0].mxu0
        %v701 = vadd.f32 0.0, %v700
        %v702 = vpop.f32.mrb[0].mxu0
        %703 = vmatprep.mubr.f32.mxu0 0.0
        %704 = vmatmul.mubr.f32.gmra.mrb[0].mxu0 %v514
        %v705 = vpop.f32.mrb[0].mxu0
        %v706 = vadd.f32 0.0, %v705
        %v707 = vpop.f32.mrb[0].mxu0
        %708 = vmatprep.mubr.f32.mxu0 0.0
        %709 = vmatmul.mubr.f32.gmra.mrb[0].mxu0 %v517
        %v710 = vpop.f32.mrb[0].mxu0
        %v711 = vadd.f32 0.0, %v710
        %v712 = vpop.f32.mrb[0].mxu0
        %713 = vmatprep.mubr.f32.mxu0 0.0
        %714 = vmatmul.mubr.f32.gmra.mrb[0].mxu0 %v520
        %v715 = vpop.f32.mrb[0].mxu0
        %v716 = vadd.f32 0.0, %v715
        %v717 = vpop.f32.mrb[0].mxu0
        %718 = vmatprep.mubr.f32.mxu0 0.0
        %719 = vmatmul.mubr.f32.gmra.mrb[0].mxu0 %v523
        %v720 = vpop.f32.mrb[0].mxu0
        %v721 = vadd.f32 0.0, %v720
        %v722 = vpop.f32.mrb[0].mxu0
        %723 = vmatprep.mubr.f32.mxu0 0.0
        %724 = vmatmul.mubr.f32.gmra.mrb[0].mxu0 %v526
        %v725 = vpop.f32.mrb[0].mxu0
        %v726 = vadd.f32 0.0, %v725
        %v727 = vpop.f32.mrb[0].mxu0
        %728 = vmatprep.mubr.f32.mxu0 0.0
        %729 = vmatmul.mubr.f32.gmra.mrb[0].mxu0 %v529
        %v730 = vpop.f32.mrb[0].mxu0
        %v731 = vadd.f32 0.0, %v730
        %v732 = vpop.f32.mrb[0].mxu0
        %733 = vmatprep.mubr.f32.mxu0 0.0
        %734 = vmatmul.mubr.f32.gmra.mrb[0].mxu0 %v532
        %v735 = vpop.f32.mrb[0].mxu0
        %v736 = vadd.f32 0.0, %v735
        %v737 = vpop.f32.mrb[0].mxu0
        %738 = vmatprep.mubr.f32.mxu0 0.0
        %739 = vmatmul.mubr.f32.gmra.mrb[0].mxu0 %v535
        %v740 = vpop.f32.mrb[0].mxu0
        %v741 = vadd.f32 0.0, %v740
        %v742 = vpop.f32.mrb[0].mxu0
        %743 = vmatprep.mubr.f32.mxu0 0.0
        %744 = vmatmul.mubr.f32.gmra.mrb[0].mxu0 %v538
        %v745 = vpop.f32.mrb[0].mxu0
        %v746 = vadd.f32 0.0, %v745
        %v747 = vpop.f32.mrb[0].mxu0
        %748 = vmatprep.mubr.f32.mxu0 0.0
        %749 = vmatmul.mubr.f32.gmra.mrb[0].mxu0 %v541
        %v750 = vpop.f32.mrb[0].mxu0
        %v751 = vadd.f32 0.0, %v750
        %v752 = vpop.f32.mrb[0].mxu0
        %753 = vmatprep.mubr.f32.mxu0 0.0
        %754 = vmatmul.mubr.f32.gmra.mrb[0].mxu0 %v544
        %v755 = vpop.f32.mrb[0].mxu0
        %v756 = vadd.f32 0.0, %v755
        %v757 = vpop.f32.mrb[0].mxu0
        %758 = vmatprep.mubr.f32.mxu0 0.0
        %759 = vmatmul.mubr.f32.gmra.mrb[0].mxu0 %v547
        %v760 = vpop.f32.mrb[0].mxu0
        %v761 = vadd.f32 0.0, %v760
        %v762 = vpop.f32.mrb[0].mxu0
        %763 = vmatprep.mubr.f32.mxu0 0.0
        %764 = vmatmul.mubr.f32.gmra.mrb[0].mxu0 %v550
        %v765 = vpop.f32.mrb[0].mxu0
        %v766 = vadd.f32 0.0, %v765
        %v767 = vpop.f32.mrb[0].mxu0
        %768 = vmatprep.mubr.f32.mxu0 0.0
        %769 = vmatmul.mubr.f32.gmra.mrb[0].mxu0 %v553
        %v770 = vpop.f32.mrb[0].mxu0
        %v771 = vadd.f32 0.0, %v770
        %v772 = vpop.f32.mrb[0].mxu0
        %773 = vmatprep.mubr.f32.mxu0 0.0
        %774 = vmatmul.mubr.f32.gmra.mrb[0].mxu0 %v556
        %v775 = vpop.f32.mrb[0].mxu0
        %v776 = vadd.f32 0.0, %v775
        %v777 = vpop.f32.mrb[0].mxu0
        %778 = vmatprep.mubr.f32.mxu0 0.0
        %779 = vmatmul.mubr.f32.gmra.mrb[0].mxu0 %v559
        %v780 = vpop.f32.mrb[0].mxu0
        %v781 = vadd.f32 0.0, %v780
        %v782 = vpop.f32.mrb[0].mxu0
        %783 = vmatprep.mubr.f32.mxu0 0.0
        %784 = vmatmul.mubr.f32.gmra.mrb[0].mxu0 %v562
        %v785 = vpop.f32.mrb[0].mxu0
        %v786 = vadd.f32 0.0, %v785
        %v787 = vpop.f32.mrb[0].mxu0
        %788 = vdwg.mxu0
        %vm789 = vcmp.ge.f32.partialorder %v631, 0.5
        %vm790 = vcmp.ge.f32.partialorder %v636, 0.5
        %vm791 = vcmp.ge.f32.partialorder %v641, 0.5
        %vm792 = vcmp.ge.f32.partialorder %v646, 0.5
        %vm793 = vcmp.ge.f32.partialorder %v651, 0.5
        %vm794 = vcmp.ge.f32.partialorder %v656, 0.5
        %vm795 = vcmp.ge.f32.partialorder %v661, 0.5
        %vm796 = vcmp.ge.f32.partialorder %v666, 0.5
        %vm797 = vcmp.ge.f32.partialorder %v671, 0.5
        %vm798 = vcmp.ge.f32.partialorder %v676, 0.5
        %vm799 = vcmp.ge.f32.partialorder %v681, 0.5
        %vm800 = vcmp.ge.f32.partialorder %v686, 0.5
        %vm801 = vcmp.ge.f32.partialorder %v691, 0.5
        %vm802 = vcmp.ge.f32.partialorder %v696, 0.5
        %vm803 = vcmp.ge.f32.partialorder %v701, 0.5
        %vm804 = vcmp.ge.f32.partialorder %v706, 0.5
        %vm805 = vcmp.ge.f32.partialorder %v711, 0.5
        %vm806 = vcmp.ge.f32.partialorder %v716, 0.5
        %vm807 = vcmp.ge.f32.partialorder %v721, 0.5
        %vm808 = vcmp.ge.f32.partialorder %v726, 0.5
        %vm809 = vcmp.ge.f32.partialorder %v731, 0.5
        %vm810 = vcmp.ge.f32.partialorder %v736, 0.5
        %vm811 = vcmp.ge.f32.partialorder %v741, 0.5
        %vm812 = vcmp.ge.f32.partialorder %v746, 0.5
        %vm813 = vcmp.ge.f32.partialorder %v751, 0.5
        %vm814 = vcmp.ge.f32.partialorder %v756, 0.5
        %vm815 = vcmp.ge.f32.partialorder %v761, 0.5
        %vm816 = vcmp.ge.f32.partialorder %v766, 0.5
        %vm817 = vcmp.ge.f32.partialorder %v771, 0.5
        %vm818 = vcmp.ge.f32.partialorder %v776, 0.5
        %vm819 = vcmp.ge.f32.partialorder %v781, 0.5
        %vm820 = vcmp.ge.f32.partialorder %v786, 0.5
        %v821 = vsel %vm789, %v442, 63
        %v822 = vsel %vm790, %v442, 63
        %v823 = vsel %vm791, %v442, 63
        %v824 = vsel %vm792, %v442, 63
        %v825 = vsel %vm793, %v442, 63
        %v826 = vsel %vm794, %v442, 63
        %v827 = vsel %vm795, %v442, 63
        %v828 = vsel %vm796, %v442, 63
        %v829 = vsel %vm797, %v442, 63
        %v830 = vsel %vm798, %v442, 63
        %v831 = vsel %vm799, %v442, 63
        %v832 = vsel %vm800, %v442, 63
        %v833 = vsel %vm801, %v442, 63
        %v834 = vsel %vm802, %v442, 63
        %v835 = vsel %vm803, %v442, 63
        %v836 = vsel %vm804, %v442, 63
        %v837 = vsel %vm805, %v442, 63
        %v838 = vsel %vm806, %v442, 63
        %v839 = vsel %vm807, %v442, 63
        %v840 = vsel %vm808, %v442, 63
        %v841 = vsel %vm809, %v442, 63
        %v842 = vsel %vm810, %v442, 63
        %v843 = vsel %vm811, %v442, 63
        %v844 = vsel %vm812, %v442, 63
        %v845 = vsel %vm813, %v442, 63
        %v846 = vsel %vm814, %v442, 63
        %v847 = vsel %vm815, %v442, 63
        %v848 = vsel %vm816, %v442, 63
        %v849 = vsel %vm817, %v442, 63
        %v850 = vsel %vm818, %v442, 63
        %v851 = vsel %vm819, %v442, 63
        %v852 = vsel %vm820, %v442, 63
        %v853 = vsel %vm467, %v821, 2147483647
        %v854 = vand.u32 %v853, 65535
        %v855 = vshra.s32 %v853, 16
        %v856 = vcvt.s32.f32 %v854
        %v857 = vcvt.s32.f32 %v855
        %858 = vmin.xlane.f32.xlu0 %v857
        %v859 = vpop.xlane.xlu0 %858
        %vm860 = vcmp.eq.f32.partialorder %v857, %v859
        %v861 = vsel %vm860, %v856, inf
        %862 = vmin.xlane.f32.xlu0 %v861
        %v863 = vpop.xlane.xlu0 %862
        %v864 = vcvt.f32.s32 %v863
        %v865 = vcvt.f32.s32 %v859
        %v866 = vshll.u32 %v865, 16
        %v867 = vadd.s32 %v866, %v864
        %v868 = vsel %vm467, %v822, 2147483647
        %v869 = vand.u32 %v868, 65535
        %v870 = vshra.s32 %v868, 16
        %v871 = vcvt.s32.f32 %v869
        %v872 = vcvt.s32.f32 %v870
        %873 = vmin.xlane.f32.xlu0 %v872
        %v874 = vpop.xlane.xlu0 %873
        %vm875 = vcmp.eq.f32.partialorder %v872, %v874
        %v876 = vsel %vm875, %v871, inf
        %877 = vmin.xlane.f32.xlu0 %v876
        %v878 = vpop.xlane.xlu0 %877
        %v879 = vcvt.f32.s32 %v878
        %v880 = vcvt.f32.s32 %v874
        %v881 = vshll.u32 %v880, 16
        %v882 = vadd.s32 %v881, %v879
        %v883 = vsel %vm467, %v823, 2147483647
        %v884 = vand.u32 %v883, 65535
        %v885 = vshra.s32 %v883, 16
        %v886 = vcvt.s32.f32 %v884
        %v887 = vcvt.s32.f32 %v885
        %888 = vmin.xlane.f32.xlu0 %v887
        %v889 = vpop.xlane.xlu0 %888
        %vm890 = vcmp.eq.f32.partialorder %v887, %v889
        %v891 = vsel %vm890, %v886, inf
        %892 = vmin.xlane.f32.xlu0 %v891
        %v893 = vpop.xlane.xlu0 %892
        %v894 = vcvt.f32.s32 %v893
        %v895 = vcvt.f32.s32 %v889
        %v896 = vshll.u32 %v895, 16
        %v897 = vadd.s32 %v896, %v894
        %v898 = vsel %vm467, %v824, 2147483647
        %v899 = vand.u32 %v898, 65535
        %v900 = vshra.s32 %v898, 16
        %v901 = vcvt.s32.f32 %v899
        %v902 = vcvt.s32.f32 %v900
        %903 = vmin.xlane.f32.xlu0 %v902
        %v904 = vpop.xlane.xlu0 %903
        %vm905 = vcmp.eq.f32.partialorder %v902, %v904
        %v906 = vsel %vm905, %v901, inf
        %907 = vmin.xlane.f32.xlu0 %v906
        %v908 = vpop.xlane.xlu0 %907
        %v909 = vcvt.f32.s32 %v908
        %v910 = vcvt.f32.s32 %v904
        %v911 = vshll.u32 %v910, 16
        %v912 = vadd.s32 %v911, %v909
        %v913 = vsel %vm467, %v825, 2147483647
        %v914 = vand.u32 %v913, 65535
        %v915 = vshra.s32 %v913, 16
        %v916 = vcvt.s32.f32 %v914
        %v917 = vcvt.s32.f32 %v915
        %918 = vmin.xlane.f32.xlu0 %v917
        %v919 = vpop.xlane.xlu0 %918
        %vm920 = vcmp.eq.f32.partialorder %v917, %v919
        %v921 = vsel %vm920, %v916, inf
        %922 = vmin.xlane.f32.xlu0 %v921
        %v923 = vpop.xlane.xlu0 %922
        %v924 = vcvt.f32.s32 %v923
        %v925 = vcvt.f32.s32 %v919
        %v926 = vshll.u32 %v925, 16
        %v927 = vadd.s32 %v926, %v924
        %v928 = vsel %vm467, %v826, 2147483647
        %v929 = vand.u32 %v928, 65535
        %v930 = vshra.s32 %v928, 16
        %v931 = vcvt.s32.f32 %v929
        %v932 = vcvt.s32.f32 %v930
        %933 = vmin.xlane.f32.xlu0 %v932
        %v934 = vpop.xlane.xlu0 %933
        %vm935 = vcmp.eq.f32.partialorder %v932, %v934
        %v936 = vsel %vm935, %v931, inf
        %937 = vmin.xlane.f32.xlu0 %v936
        %v938 = vpop.xlane.xlu0 %937
        %v939 = vcvt.f32.s32 %v938
        %v940 = vcvt.f32.s32 %v934
        %v941 = vshll.u32 %v940, 16
        %v942 = vadd.s32 %v941, %v939
        %v943 = vsel %vm467, %v827, 2147483647
        %v944 = vand.u32 %v943, 65535
        %v945 = vshra.s32 %v943, 16
        %v946 = vcvt.s32.f32 %v944
        %v947 = vcvt.s32.f32 %v945
        %948 = vmin.xlane.f32.xlu0 %v947
        %v949 = vpop.xlane.xlu0 %948
        %vm950 = vcmp.eq.f32.partialorder %v947, %v949
        %v951 = vsel %vm950, %v946, inf
        %952 = vmin.xlane.f32.xlu0 %v951
        %v953 = vpop.xlane.xlu0 %952
        %v954 = vcvt.f32.s32 %v953
        %v955 = vcvt.f32.s32 %v949
        %v956 = vshll.u32 %v955, 16
        %v957 = vadd.s32 %v956, %v954
        %v958 = vsel %vm467, %v828, 2147483647
        %v959 = vand.u32 %v958, 65535
        %v960 = vshra.s32 %v958, 16
        %v961 = vcvt.s32.f32 %v959
        %v962 = vcvt.s32.f32 %v960
        %963 = vmin.xlane.f32.xlu0 %v962
        %v964 = vpop.xlane.xlu0 %963
        %vm965 = vcmp.eq.f32.partialorder %v962, %v964
        %v966 = vsel %vm965, %v961, inf
        %967 = vmin.xlane.f32.xlu0 %v966
        %v968 = vpop.xlane.xlu0 %967
        %v969 = vcvt.f32.s32 %v968
        %v970 = vcvt.f32.s32 %v964
        %v971 = vshll.u32 %v970, 16
        %v972 = vadd.s32 %v971, %v969
        %v973 = vsel %vm467, %v829, 2147483647
        %v974 = vand.u32 %v973, 65535
        %v975 = vshra.s32 %v973, 16
        %v976 = vcvt.s32.f32 %v974
        %v977 = vcvt.s32.f32 %v975
        %978 = vmin.xlane.f32.xlu0 %v977
        %v979 = vpop.xlane.xlu0 %978
        %vm980 = vcmp.eq.f32.partialorder %v977, %v979
        %v981 = vsel %vm980, %v976, inf
        %982 = vmin.xlane.f32.xlu0 %v981
        %v983 = vpop.xlane.xlu0 %982
        %v984 = vcvt.f32.s32 %v983
        %v985 = vcvt.f32.s32 %v979
        %v986 = vshll.u32 %v985, 16
        %v987 = vadd.s32 %v986, %v984
        %v988 = vsel %vm467, %v830, 2147483647
        %v989 = vand.u32 %v988, 65535
        %v990 = vshra.s32 %v988, 16
        %v991 = vcvt.s32.f32 %v989
        %v992 = vcvt.s32.f32 %v990
        %993 = vmin.xlane.f32.xlu0 %v992
        %v994 = vpop.xlane.xlu0 %993
        %vm995 = vcmp.eq.f32.partialorder %v992, %v994
        %v996 = vsel %vm995, %v991, inf
        %997 = vmin.xlane.f32.xlu0 %v996
        %v998 = vpop.xlane.xlu0 %997
        %v999 = vcvt.f32.s32 %v998
        %v1000 = vcvt.f32.s32 %v994
        %v1001 = vshll.u32 %v1000, 16
        %v1002 = vadd.s32 %v1001, %v999
        %v1003 = vsel %vm467, %v831, 2147483647
        %v1004 = vand.u32 %v1003, 65535
        %v1005 = vshra.s32 %v1003, 16
        %v1006 = vcvt.s32.f32 %v1004
        %v1007 = vcvt.s32.f32 %v1005
        %1008 = vmin.xlane.f32.xlu0 %v1007
        %v1009 = vpop.xlane.xlu0 %1008
        %vm1010 = vcmp.eq.f32.partialorder %v1007, %v1009
        %v1011 = vsel %vm1010, %v1006, inf
        %1012 = vmin.xlane.f32.xlu0 %v1011
        %v1013 = vpop.xlane.xlu0 %1012
        %v1014 = vcvt.f32.s32 %v1013
        %v1015 = vcvt.f32.s32 %v1009
        %v1016 = vshll.u32 %v1015, 16
        %v1017 = vadd.s32 %v1016, %v1014
        %v1018 = vsel %vm467, %v832, 2147483647
        %v1019 = vand.u32 %v1018, 65535
        %v1020 = vshra.s32 %v1018, 16
        %v1021 = vcvt.s32.f32 %v1019
        %v1022 = vcvt.s32.f32 %v1020
        %1023 = vmin.xlane.f32.xlu0 %v1022
        %v1024 = vpop.xlane.xlu0 %1023
        %vm1025 = vcmp.eq.f32.partialorder %v1022, %v1024
        %v1026 = vsel %vm1025, %v1021, inf
        %1027 = vmin.xlane.f32.xlu0 %v1026
        %v1028 = vpop.xlane.xlu0 %1027
        %v1029 = vcvt.f32.s32 %v1028
        %v1030 = vcvt.f32.s32 %v1024
        %v1031 = vshll.u32 %v1030, 16
        %v1032 = vadd.s32 %v1031, %v1029
        %v1033 = vsel %vm467, %v833, 2147483647
        %v1034 = vand.u32 %v1033, 65535
        %v1035 = vshra.s32 %v1033, 16
        %v1036 = vcvt.s32.f32 %v1034
        %v1037 = vcvt.s32.f32 %v1035
        %1038 = vmin.xlane.f32.xlu0 %v1037
        %v1039 = vpop.xlane.xlu0 %1038
        %vm1040 = vcmp.eq.f32.partialorder %v1037, %v1039
        %v1041 = vsel %vm1040, %v1036, inf
        %1042 = vmin.xlane.f32.xlu0 %v1041
        %v1043 = vpop.xlane.xlu0 %1042
        %v1044 = vcvt.f32.s32 %v1043
        %v1045 = vcvt.f32.s32 %v1039
        %v1046 = vshll.u32 %v1045, 16
        %v1047 = vadd.s32 %v1046, %v1044
        %v1048 = vsel %vm467, %v834, 2147483647
        %v1049 = vand.u32 %v1048, 65535
        %v1050 = vshra.s32 %v1048, 16
        %v1051 = vcvt.s32.f32 %v1049
        %v1052 = vcvt.s32.f32 %v1050
        %1053 = vmin.xlane.f32.xlu0 %v1052
        %v1054 = vpop.xlane.xlu0 %1053
        %vm1055 = vcmp.eq.f32.partialorder %v1052, %v1054
        %v1056 = vsel %vm1055, %v1051, inf
        %1057 = vmin.xlane.f32.xlu0 %v1056
        %v1058 = vpop.xlane.xlu0 %1057
        %v1059 = vcvt.f32.s32 %v1058
        %v1060 = vcvt.f32.s32 %v1054
        %v1061 = vshll.u32 %v1060, 16
        %v1062 = vadd.s32 %v1061, %v1059
        %v1063 = vsel %vm467, %v835, 2147483647
        %v1064 = vand.u32 %v1063, 65535
        %v1065 = vshra.s32 %v1063, 16
        %v1066 = vcvt.s32.f32 %v1064
        %v1067 = vcvt.s32.f32 %v1065
        %1068 = vmin.xlane.f32.xlu0 %v1067
        %v1069 = vpop.xlane.xlu0 %1068
        %vm1070 = vcmp.eq.f32.partialorder %v1067, %v1069
        %v1071 = vsel %vm1070, %v1066, inf
        %1072 = vmin.xlane.f32.xlu0 %v1071
        %v1073 = vpop.xlane.xlu0 %1072
        %v1074 = vcvt.f32.s32 %v1073
        %v1075 = vcvt.f32.s32 %v1069
        %v1076 = vshll.u32 %v1075, 16
        %v1077 = vadd.s32 %v1076, %v1074
        %v1078 = vsel %vm467, %v836, 2147483647
        %v1079 = vand.u32 %v1078, 65535
        %v1080 = vshra.s32 %v1078, 16
        %v1081 = vcvt.s32.f32 %v1079
        %v1082 = vcvt.s32.f32 %v1080
        %1083 = vmin.xlane.f32.xlu0 %v1082
        %v1084 = vpop.xlane.xlu0 %1083
        %vm1085 = vcmp.eq.f32.partialorder %v1082, %v1084
        %v1086 = vsel %vm1085, %v1081, inf
        %1087 = vmin.xlane.f32.xlu0 %v1086
        %v1088 = vpop.xlane.xlu0 %1087
        %v1089 = vcvt.f32.s32 %v1088
        %v1090 = vcvt.f32.s32 %v1084
        %v1091 = vshll.u32 %v1090, 16
        %v1092 = vadd.s32 %v1091, %v1089
        %v1093 = vsel %vm467, %v837, 2147483647
        %v1094 = vand.u32 %v1093, 65535
        %v1095 = vshra.s32 %v1093, 16
        %v1096 = vcvt.s32.f32 %v1094
        %v1097 = vcvt.s32.f32 %v1095
        %1098 = vmin.xlane.f32.xlu0 %v1097
        %v1099 = vpop.xlane.xlu0 %1098
        %vm1100 = vcmp.eq.f32.partialorder %v1097, %v1099
        %v1101 = vsel %vm1100, %v1096, inf
        %1102 = vmin.xlane.f32.xlu0 %v1101
        %v1103 = vpop.xlane.xlu0 %1102
        %v1104 = vcvt.f32.s32 %v1103
        %v1105 = vcvt.f32.s32 %v1099
        %v1106 = vshll.u32 %v1105, 16
        %v1107 = vadd.s32 %v1106, %v1104
        %v1108 = vsel %vm467, %v838, 2147483647
        %v1109 = vand.u32 %v1108, 65535
        %v1110 = vshra.s32 %v1108, 16
        %v1111 = vcvt.s32.f32 %v1109
        %v1112 = vcvt.s32.f32 %v1110
        %1113 = vmin.xlane.f32.xlu0 %v1112
        %v1114 = vpop.xlane.xlu0 %1113
        %vm1115 = vcmp.eq.f32.partialorder %v1112, %v1114
        %v1116 = vsel %vm1115, %v1111, inf
        %1117 = vmin.xlane.f32.xlu0 %v1116
        %v1118 = vpop.xlane.xlu0 %1117
        %v1119 = vcvt.f32.s32 %v1118
        %v1120 = vcvt.f32.s32 %v1114
        %v1121 = vshll.u32 %v1120, 16
        %v1122 = vadd.s32 %v1121, %v1119
        %v1123 = vsel %vm467, %v839, 2147483647
        %v1124 = vand.u32 %v1123, 65535
        %v1125 = vshra.s32 %v1123, 16
        %v1126 = vcvt.s32.f32 %v1124
        %v1127 = vcvt.s32.f32 %v1125
        %1128 = vmin.xlane.f32.xlu0 %v1127
        %v1129 = vpop.xlane.xlu0 %1128
        %vm1130 = vcmp.eq.f32.partialorder %v1127, %v1129
        %v1131 = vsel %vm1130, %v1126, inf
        %1132 = vmin.xlane.f32.xlu0 %v1131
        %v1133 = vpop.xlane.xlu0 %1132
        %v1134 = vcvt.f32.s32 %v1133
        %v1135 = vcvt.f32.s32 %v1129
        %v1136 = vshll.u32 %v1135, 16
        %v1137 = vadd.s32 %v1136, %v1134
        %v1138 = vsel %vm467, %v840, 2147483647
        %v1139 = vand.u32 %v1138, 65535
        %v1140 = vshra.s32 %v1138, 16
        %v1141 = vcvt.s32.f32 %v1139
        %v1142 = vcvt.s32.f32 %v1140
        %1143 = vmin.xlane.f32.xlu0 %v1142
        %v1144 = vpop.xlane.xlu0 %1143
        %vm1145 = vcmp.eq.f32.partialorder %v1142, %v1144
        %v1146 = vsel %vm1145, %v1141, inf
        %1147 = vmin.xlane.f32.xlu0 %v1146
        %v1148 = vpop.xlane.xlu0 %1147
        %v1149 = vcvt.f32.s32 %v1148
        %v1150 = vcvt.f32.s32 %v1144
        %v1151 = vshll.u32 %v1150, 16
        %v1152 = vadd.s32 %v1151, %v1149
        %v1153 = vsel %vm467, %v841, 2147483647
        %v1154 = vand.u32 %v1153, 65535
        %v1155 = vshra.s32 %v1153, 16
        %v1156 = vcvt.s32.f32 %v1154
        %v1157 = vcvt.s32.f32 %v1155
        %1158 = vmin.xlane.f32.xlu0 %v1157
        %v1159 = vpop.xlane.xlu0 %1158
        %vm1160 = vcmp.eq.f32.partialorder %v1157, %v1159
        %v1161 = vsel %vm1160, %v1156, inf
        %1162 = vmin.xlane.f32.xlu0 %v1161
        %v1163 = vpop.xlane.xlu0 %1162
        %v1164 = vcvt.f32.s32 %v1163
        %v1165 = vcvt.f32.s32 %v1159
        %v1166 = vshll.u32 %v1165, 16
        %v1167 = vadd.s32 %v1166, %v1164
        %v1168 = vsel %vm467, %v842, 2147483647
        %v1169 = vand.u32 %v1168, 65535
        %v1170 = vshra.s32 %v1168, 16
        %v1171 = vcvt.s32.f32 %v1169
        %v1172 = vcvt.s32.f32 %v1170
        %1173 = vmin.xlane.f32.xlu0 %v1172
        %v1174 = vpop.xlane.xlu0 %1173
        %vm1175 = vcmp.eq.f32.partialorder %v1172, %v1174
        %v1176 = vsel %vm1175, %v1171, inf
        %1177 = vmin.xlane.f32.xlu0 %v1176
        %v1178 = vpop.xlane.xlu0 %1177
        %v1179 = vcvt.f32.s32 %v1178
        %v1180 = vcvt.f32.s32 %v1174
        %v1181 = vshll.u32 %v1180, 16
        %v1182 = vadd.s32 %v1181, %v1179
        %v1183 = vsel %vm467, %v843, 2147483647
        %v1184 = vand.u32 %v1183, 65535
        %v1185 = vshra.s32 %v1183, 16
        %v1186 = vcvt.s32.f32 %v1184
        %v1187 = vcvt.s32.f32 %v1185
        %1188 = vmin.xlane.f32.xlu0 %v1187
        %v1189 = vpop.xlane.xlu0 %1188
        %vm1190 = vcmp.eq.f32.partialorder %v1187, %v1189
        %v1191 = vsel %vm1190, %v1186, inf
        %1192 = vmin.xlane.f32.xlu0 %v1191
        %v1193 = vpop.xlane.xlu0 %1192
        %v1194 = vcvt.f32.s32 %v1193
        %v1195 = vcvt.f32.s32 %v1189
        %v1196 = vshll.u32 %v1195, 16
        %v1197 = vadd.s32 %v1196, %v1194
        %v1198 = vsel %vm467, %v844, 2147483647
        %v1199 = vand.u32 %v1198, 65535
        %v1200 = vshra.s32 %v1198, 16
        %v1201 = vcvt.s32.f32 %v1199
        %v1202 = vcvt.s32.f32 %v1200
        %1203 = vmin.xlane.f32.xlu0 %v1202
        %v1204 = vpop.xlane.xlu0 %1203
        %vm1205 = vcmp.eq.f32.partialorder %v1202, %v1204
        %v1206 = vsel %vm1205, %v1201, inf
        %1207 = vmin.xlane.f32.xlu0 %v1206
        %v1208 = vpop.xlane.xlu0 %1207
        %v1209 = vcvt.f32.s32 %v1208
        %v1210 = vcvt.f32.s32 %v1204
        %v1211 = vshll.u32 %v1210, 16
        %v1212 = vadd.s32 %v1211, %v1209
        %v1213 = vsel %vm467, %v845, 2147483647
        %v1214 = vand.u32 %v1213, 65535
        %v1215 = vshra.s32 %v1213, 16
        %v1216 = vcvt.s32.f32 %v1214
        %v1217 = vcvt.s32.f32 %v1215
        %1218 = vmin.xlane.f32.xlu0 %v1217
        %v1219 = vpop.xlane.xlu0 %1218
        %vm1220 = vcmp.eq.f32.partialorder %v1217, %v1219
        %v1221 = vsel %vm1220, %v1216, inf
        %1222 = vmin.xlane.f32.xlu0 %v1221
        %v1223 = vpop.xlane.xlu0 %1222
        %v1224 = vcvt.f32.s32 %v1223
        %v1225 = vcvt.f32.s32 %v1219
        %v1226 = vshll.u32 %v1225, 16
        %v1227 = vadd.s32 %v1226, %v1224
        %v1228 = vsel %vm467, %v846, 2147483647
        %v1229 = vand.u32 %v1228, 65535
        %v1230 = vshra.s32 %v1228, 16
        %v1231 = vcvt.s32.f32 %v1229
        %v1232 = vcvt.s32.f32 %v1230
        %1233 = vmin.xlane.f32.xlu0 %v1232
        %v1234 = vpop.xlane.xlu0 %1233
        %vm1235 = vcmp.eq.f32.partialorder %v1232, %v1234
        %v1236 = vsel %vm1235, %v1231, inf
        %1237 = vmin.xlane.f32.xlu0 %v1236
        %v1238 = vpop.xlane.xlu0 %1237
        %v1239 = vcvt.f32.s32 %v1238
        %v1240 = vcvt.f32.s32 %v1234
        %v1241 = vshll.u32 %v1240, 16
        %v1242 = vadd.s32 %v1241, %v1239
        %v1243 = vsel %vm467, %v847, 2147483647
        %v1244 = vand.u32 %v1243, 65535
        %v1245 = vshra.s32 %v1243, 16
        %v1246 = vcvt.s32.f32 %v1244
        %v1247 = vcvt.s32.f32 %v1245
        %1248 = vmin.xlane.f32.xlu0 %v1247
        %v1249 = vpop.xlane.xlu0 %1248
        %vm1250 = vcmp.eq.f32.partialorder %v1247, %v1249
        %v1251 = vsel %vm1250, %v1246, inf
        %1252 = vmin.xlane.f32.xlu0 %v1251
        %v1253 = vpop.xlane.xlu0 %1252
        %v1254 = vcvt.f32.s32 %v1253
        %v1255 = vcvt.f32.s32 %v1249
        %v1256 = vshll.u32 %v1255, 16
        %v1257 = vadd.s32 %v1256, %v1254
        %v1258 = vsel %vm467, %v848, 2147483647
        %v1259 = vand.u32 %v1258, 65535
        %v1260 = vshra.s32 %v1258, 16
        %v1261 = vcvt.s32.f32 %v1259
        %v1262 = vcvt.s32.f32 %v1260
        %1263 = vmin.xlane.f32.xlu0 %v1262
        %v1264 = vpop.xlane.xlu0 %1263
        %vm1265 = vcmp.eq.f32.partialorder %v1262, %v1264
        %v1266 = vsel %vm1265, %v1261, inf
        %1267 = vmin.xlane.f32.xlu0 %v1266
        %v1268 = vpop.xlane.xlu0 %1267
        %v1269 = vcvt.f32.s32 %v1268
        %v1270 = vcvt.f32.s32 %v1264
        %v1271 = vshll.u32 %v1270, 16
        %v1272 = vadd.s32 %v1271, %v1269
        %v1273 = vsel %vm467, %v849, 2147483647
        %v1274 = vand.u32 %v1273, 65535
        %v1275 = vshra.s32 %v1273, 16
        %v1276 = vcvt.s32.f32 %v1274
        %v1277 = vcvt.s32.f32 %v1275
        %1278 = vmin.xlane.f32.xlu0 %v1277
        %v1279 = vpop.xlane.xlu0 %1278
        %vm1280 = vcmp.eq.f32.partialorder %v1277, %v1279
        %v1281 = vsel %vm1280, %v1276, inf
        %1282 = vmin.xlane.f32.xlu0 %v1281
        %v1283 = vpop.xlane.xlu0 %1282
        %v1284 = vcvt.f32.s32 %v1283
        %v1285 = vcvt.f32.s32 %v1279
        %v1286 = vshll.u32 %v1285, 16
        %v1287 = vadd.s32 %v1286, %v1284
        %v1288 = vsel %vm467, %v850, 2147483647
        %v1289 = vand.u32 %v1288, 65535
        %v1290 = vshra.s32 %v1288, 16
        %v1291 = vcvt.s32.f32 %v1289
        %v1292 = vcvt.s32.f32 %v1290
        %1293 = vmin.xlane.f32.xlu0 %v1292
        %v1294 = vpop.xlane.xlu0 %1293
        %vm1295 = vcmp.eq.f32.partialorder %v1292, %v1294
        %v1296 = vsel %vm1295, %v1291, inf
        %1297 = vmin.xlane.f32.xlu0 %v1296
        %v1298 = vpop.xlane.xlu0 %1297
        %v1299 = vcvt.f32.s32 %v1298
        %v1300 = vcvt.f32.s32 %v1294
        %v1301 = vshll.u32 %v1300, 16
        %v1302 = vadd.s32 %v1301, %v1299
        %v1303 = vsel %vm467, %v851, 2147483647
        %v1304 = vand.u32 %v1303, 65535
        %v1305 = vshra.s32 %v1303, 16
        %v1306 = vcvt.s32.f32 %v1304
        %v1307 = vcvt.s32.f32 %v1305
        %1308 = vmin.xlane.f32.xlu0 %v1307
        %v1309 = vpop.xlane.xlu0 %1308
        %vm1310 = vcmp.eq.f32.partialorder %v1307, %v1309
        %v1311 = vsel %vm1310, %v1306, inf
        %1312 = vmin.xlane.f32.xlu0 %v1311
        %v1313 = vpop.xlane.xlu0 %1312
        %v1314 = vcvt.f32.s32 %v1313
        %v1315 = vcvt.f32.s32 %v1309
        %v1316 = vshll.u32 %v1315, 16
        %v1317 = vadd.s32 %v1316, %v1314
        %v1318 = vsel %vm467, %v852, 2147483647
        %v1319 = vand.u32 %v1318, 65535
        %v1320 = vshra.s32 %v1318, 16
        %v1321 = vcvt.s32.f32 %v1319
        %v1322 = vcvt.s32.f32 %v1320
        %1323 = vmin.xlane.f32.xlu0 %v1322
        %v1324 = vpop.xlane.xlu0 %1323
        %vm1325 = vcmp.eq.f32.partialorder %v1322, %v1324
        %v1326 = vsel %vm1325, %v1321, inf
        %1327 = vmin.xlane.f32.xlu0 %v1326
        %v1328 = vpop.xlane.xlu0 %1327
        %v1329 = vcvt.f32.s32 %v1328
        %v1330 = vcvt.f32.s32 %v1324
        %v1331 = vshll.u32 %v1330, 16
        %v1332 = vadd.s32 %v1331, %v1329
        %vm1333 = vcmp.eq.s32.totalorder %v442, %v867
        %vm1334 = vcmp.eq.s32.totalorder %v442, %v882
        %vm1335 = vcmp.eq.s32.totalorder %v442, %v897
        %vm1336 = vcmp.eq.s32.totalorder %v442, %v912
        %vm1337 = vcmp.eq.s32.totalorder %v442, %v927
        %vm1338 = vcmp.eq.s32.totalorder %v442, %v942
        %vm1339 = vcmp.eq.s32.totalorder %v442, %v957
        %vm1340 = vcmp.eq.s32.totalorder %v442, %v972
        %vm1341 = vcmp.eq.s32.totalorder %v442, %v987
        %vm1342 = vcmp.eq.s32.totalorder %v442, %v1002
        %vm1343 = vcmp.eq.s32.totalorder %v442, %v1017
        %vm1344 = vcmp.eq.s32.totalorder %v442, %v1032
        %vm1345 = vcmp.eq.s32.totalorder %v442, %v1047
        %vm1346 = vcmp.eq.s32.totalorder %v442, %v1062
        %vm1347 = vcmp.eq.s32.totalorder %v442, %v1077
        %vm1348 = vcmp.eq.s32.totalorder %v442, %v1092
        %vm1349 = vcmp.eq.s32.totalorder %v442, %v1107
        %vm1350 = vcmp.eq.s32.totalorder %v442, %v1122
        %vm1351 = vcmp.eq.s32.totalorder %v442, %v1137
        %vm1352 = vcmp.eq.s32.totalorder %v442, %v1152
        %vm1353 = vcmp.eq.s32.totalorder %v442, %v1167
        %vm1354 = vcmp.eq.s32.totalorder %v442, %v1182
        %vm1355 = vcmp.eq.s32.totalorder %v442, %v1197
        %vm1356 = vcmp.eq.s32.totalorder %v442, %v1212
        %vm1357 = vcmp.eq.s32.totalorder %v442, %v1227
        %vm1358 = vcmp.eq.s32.totalorder %v442, %v1242
        %vm1359 = vcmp.eq.s32.totalorder %v442, %v1257
        %vm1360 = vcmp.eq.s32.totalorder %v442, %v1272
        %vm1361 = vcmp.eq.s32.totalorder %v442, %v1287
        %vm1362 = vcmp.eq.s32.totalorder %v442, %v1302
        %vm1363 = vcmp.eq.s32.totalorder %v442, %v1317
        %vm1364 = vcmp.eq.s32.totalorder %v442, %v1332
        %v1365 = vsel %vm1333, %v400, 0.0
        %v1366 = vsel %vm1334, %v401, 0.0
        %v1367 = vsel %vm1335, %v402, 0.0
        %v1368 = vsel %vm1336, %v403, 0.0
        %v1369 = vsel %vm1337, %v404, 0.0
        %v1370 = vsel %vm1338, %v405, 0.0
        %v1371 = vsel %vm1339, %v406, 0.0
        %v1372 = vsel %vm1340, %v407, 0.0
        %v1373 = vsel %vm1341, %v408, 0.0
        %v1374 = vsel %vm1342, %v409, 0.0
        %v1375 = vsel %vm1343, %v410, 0.0
        %v1376 = vsel %vm1344, %v411, 0.0
        %v1377 = vsel %vm1345, %v412, 0.0
        %v1378 = vsel %vm1346, %v413, 0.0
        %v1379 = vsel %vm1347, %v414, 0.0
        %v1380 = vsel %vm1348, %v415, 0.0
        %v1381 = vsel %vm1349, %v416, 0.0
        %v1382 = vsel %vm1350, %v417, 0.0
        %v1383 = vsel %vm1351, %v418, 0.0
        %v1384 = vsel %vm1352, %v419, 0.0
        %v1385 = vsel %vm1353, %v420, 0.0
        %v1386 = vsel %vm1354, %v421, 0.0
        %v1387 = vsel %vm1355, %v422, 0.0
        %v1388 = vsel %vm1356, %v423, 0.0
        %v1389 = vsel %vm1357, %v424, 0.0
        %v1390 = vsel %vm1358, %v425, 0.0
        %v1391 = vsel %vm1359, %v426, 0.0
        %v1392 = vsel %vm1360, %v427, 0.0
        %v1393 = vsel %vm1361, %v428, 0.0
        %v1394 = vsel %vm1362, %v429, 0.0
        %v1395 = vsel %vm1363, %v430, 0.0
        %v1396 = vsel %vm1364, %v431, 0.0
        %v1397 = vsel %vm467, %v1365, 0.0
        %1398 = vadd.xlane.f32.xlu0 %v1397
        %v1399 = vpop.xlane.xlu0 %1398
        %v1400 = vsel %vm467, %v1366, 0.0
        %1401 = vadd.xlane.f32.xlu0 %v1400
        %v1402 = vpop.xlane.xlu0 %1401
        %v1403 = vsel %vm467, %v1367, 0.0
        %1404 = vadd.xlane.f32.xlu0 %v1403
        %v1405 = vpop.xlane.xlu0 %1404
        %v1406 = vsel %vm467, %v1368, 0.0
        %1407 = vadd.xlane.f32.xlu0 %v1406
        %v1408 = vpop.xlane.xlu0 %1407
        %v1409 = vsel %vm467, %v1369, 0.0
        %1410 = vadd.xlane.f32.xlu0 %v1409
        %v1411 = vpop.xlane.xlu0 %1410
        %v1412 = vsel %vm467, %v1370, 0.0
        %1413 = vadd.xlane.f32.xlu0 %v1412
        %v1414 = vpop.xlane.xlu0 %1413
        %v1415 = vsel %vm467, %v1371, 0.0
        %1416 = vadd.xlane.f32.xlu0 %v1415
        %v1417 = vpop.xlane.xlu0 %1416
        %v1418 = vsel %vm467, %v1372, 0.0
        %1419 = vadd.xlane.f32.xlu0 %v1418
        %v1420 = vpop.xlane.xlu0 %1419
        %v1421 = vsel %vm467, %v1373, 0.0
        %1422 = vadd.xlane.f32.xlu0 %v1421
        %v1423 = vpop.xlane.xlu0 %1422
        %v1424 = vsel %vm467, %v1374, 0.0
        %1425 = vadd.xlane.f32.xlu0 %v1424
        %v1426 = vpop.xlane.xlu0 %1425
        %v1427 = vsel %vm467, %v1375, 0.0
        %1428 = vadd.xlane.f32.xlu0 %v1427
        %v1429 = vpop.xlane.xlu0 %1428
        %v1430 = vsel %vm467, %v1376, 0.0
        %1431 = vadd.xlane.f32.xlu0 %v1430
        %v1432 = vpop.xlane.xlu0 %1431
        %v1433 = vsel %vm467, %v1377, 0.0
        %1434 = vadd.xlane.f32.xlu0 %v1433
        %v1435 = vpop.xlane.xlu0 %1434
        %v1436 = vsel %vm467, %v1378, 0.0
        %1437 = vadd.xlane.f32.xlu0 %v1436
        %v1438 = vpop.xlane.xlu0 %1437
        %v1439 = vsel %vm467, %v1379, 0.0
        %1440 = vadd.xlane.f32.xlu0 %v1439
        %v1441 = vpop.xlane.xlu0 %1440
        %v1442 = vsel %vm467, %v1380, 0.0
        %1443 = vadd.xlane.f32.xlu0 %v1442
        %v1444 = vpop.xlane.xlu0 %1443
        %v1445 = vsel %vm467, %v1381, 0.0
        %1446 = vadd.xlane.f32.xlu0 %v1445
        %v1447 = vpop.xlane.xlu0 %1446
        %v1448 = vsel %vm467, %v1382, 0.0
        %1449 = vadd.xlane.f32.xlu0 %v1448
        %v1450 = vpop.xlane.xlu0 %1449
        %v1451 = vsel %vm467, %v1383, 0.0
        %1452 = vadd.xlane.f32.xlu0 %v1451
        %v1453 = vpop.xlane.xlu0 %1452
        %v1454 = vsel %vm467, %v1384, 0.0
        %1455 = vadd.xlane.f32.xlu0 %v1454
        %v1456 = vpop.xlane.xlu0 %1455
        %v1457 = vsel %vm467, %v1385, 0.0
        %1458 = vadd.xlane.f32.xlu0 %v1457
        %v1459 = vpop.xlane.xlu0 %1458
        %v1460 = vsel %vm467, %v1386, 0.0
        %1461 = vadd.xlane.f32.xlu0 %v1460
        %v1462 = vpop.xlane.xlu0 %1461
        %v1463 = vsel %vm467, %v1387, 0.0
        %1464 = vadd.xlane.f32.xlu0 %v1463
        %v1465 = vpop.xlane.xlu0 %1464
        %v1466 = vsel %vm467, %v1388, 0.0
        %1467 = vadd.xlane.f32.xlu0 %v1466
        %v1468 = vpop.xlane.xlu0 %1467
        %v1469 = vsel %vm467, %v1389, 0.0
        %1470 = vadd.xlane.f32.xlu0 %v1469
        %v1471 = vpop.xlane.xlu0 %1470
        %v1472 = vsel %vm467, %v1390, 0.0
        %1473 = vadd.xlane.f32.xlu0 %v1472
        %v1474 = vpop.xlane.xlu0 %1473
        %v1475 = vsel %vm467, %v1391, 0.0
        %1476 = vadd.xlane.f32.xlu0 %v1475
        %v1477 = vpop.xlane.xlu0 %1476
        %v1478 = vsel %vm467, %v1392, 0.0
        %1479 = vadd.xlane.f32.xlu0 %v1478
        %v1480 = vpop.xlane.xlu0 %1479
        %v1481 = vsel %vm467, %v1393, 0.0
        %1482 = vadd.xlane.f32.xlu0 %v1481
        %v1483 = vpop.xlane.xlu0 %1482
        %v1484 = vsel %vm467, %v1394, 0.0
        %1485 = vadd.xlane.f32.xlu0 %v1484
        %v1486 = vpop.xlane.xlu0 %1485
        %v1487 = vsel %vm467, %v1395, 0.0
        %1488 = vadd.xlane.f32.xlu0 %v1487
        %v1489 = vpop.xlane.xlu0 %1488
        %v1490 = vsel %vm467, %v1396, 0.0
        %1491 = vadd.xlane.f32.xlu0 %v1490
        %v1492 = vpop.xlane.xlu0 %1491
        %vm1493 = vcmask 7168
        %1494 = vst.msk [vmem:[%s270] sm:$0xff] %vm1493, %v1399
        %1495 = vst.msk [vmem:[%s270 + $0x8] sm:$0xff] %vm1493, %v1402
        %1496 = vst.msk [vmem:[%s270 + $0x10] sm:$0xff] %vm1493, %v1405
        %1497 = vst.msk [vmem:[%s270 + $0x18] sm:$0xff] %vm1493, %v1408
        %1498 = vst.msk [vmem:[%s270 + $0x20] sm:$0xff] %vm1493, %v1411
        %1499 = vst.msk [vmem:[%s270 + $0x28] sm:$0xff] %vm1493, %v1414
        %1500 = vst.msk [vmem:[%s270 + $0x30] sm:$0xff] %vm1493, %v1417
        %1501 = vst.msk [vmem:[%s270 + $0x38] sm:$0xff] %vm1493, %v1420
        %1502 = vst.msk [vmem:[%s270 + $0x40] sm:$0xff] %vm1493, %v1423
        %1503 = vst.msk [vmem:[%s270 + $0x48] sm:$0xff] %vm1493, %v1426
        %1504 = vst.msk [vmem:[%s270 + $0x50] sm:$0xff] %vm1493, %v1429
        %1505 = vst.msk [vmem:[%s270 + $0x58] sm:$0xff] %vm1493, %v1432
        %1506 = vst.msk [vmem:[%s270 + $0x60] sm:$0xff] %vm1493, %v1435
        %1507 = vst.msk [vmem:[%s270 + $0x68] sm:$0xff] %vm1493, %v1438
        %1508 = vst.msk [vmem:[%s270 + $0x70] sm:$0xff] %vm1493, %v1441
        %1509 = vst.msk [vmem:[%s270 + $0x78] sm:$0xff] %vm1493, %v1444
        %1510 = vst.msk [vmem:[%s270 + $0x80] sm:$0xff] %vm1493, %v1447
        %1511 = vst.msk [vmem:[%s270 + $0x88] sm:$0xff] %vm1493, %v1450
        %1512 = vst.msk [vmem:[%s270 + $0x90] sm:$0xff] %vm1493, %v1453
        %1513 = vst.msk [vmem:[%s270 + $0x98] sm:$0xff] %vm1493, %v1456
        %1514 = vst.msk [vmem:[%s270 + $0xa0] sm:$0xff] %vm1493, %v1459
        %1515 = vst.msk [vmem:[%s270 + $0xa8] sm:$0xff] %vm1493, %v1462
        %1516 = vst.msk [vmem:[%s270 + $0xb0] sm:$0xff] %vm1493, %v1465
        %1517 = vst.msk [vmem:[%s270 + $0xb8] sm:$0xff] %vm1493, %v1468
        %1518 = vst.msk [vmem:[%s270 + $0xc0] sm:$0xff] %vm1493, %v1471
        %1519 = vst.msk [vmem:[%s270 + $0xc8] sm:$0xff] %vm1493, %v1474
        %1520 = vst.msk [vmem:[%s270 + $0xd0] sm:$0xff] %vm1493, %v1477
        %1521 = vst.msk [vmem:[%s270 + $0xd8] sm:$0xff] %vm1493, %v1480
        %1522 = vst.msk [vmem:[%s270 + $0xe0] sm:$0xff] %vm1493, %v1483
        %1523 = vst.msk [vmem:[%s270 + $0xe8] sm:$0xff] %vm1493, %v1486
        %1524 = vst.msk [vmem:[%s270 + $0xf0] sm:$0xff] %vm1493, %v1489
        %1525 = vst.msk [vmem:[%s270 + $0xf8] sm:$0xff] %vm1493, %v1492
        %s1526 = smul.u32 32, %s20
        %p1527 = scmp.lt.s32.totalorder %s1526, 63
        %s1528 = scalar_select %p1527, %s1526, 63
        %s1529 = smul.addr %s1528, 8
        %s1530 = scalar_lea.vmem %s3, %s1529
        // Predicated region
        $region45: #{delta_depth_renderer_forward.2} parent=31 // pred_check
          %p1531 = pneg %p116
        $region46: #{delta_depth_renderer_forward.2} parent=31 // pred_check_branch
          %1533 = sbr.rel (%p1531) target = $region48
        $region47: #{delta_depth_renderer_forward.2} parent=31 // pred_region
          %s1534 = smul.u32 32, %s20
        $region48: #{delta_depth_renderer_forward.2} parent=31 // pred_fallthru
          _
      $region32: #{delta_depth_renderer_forward.2} parent=5 // pred_fallthru
        _
      %p1535 = scmp.le.s32.totalorder 2, %s15
      // Predicated region
      $region49: #{delta_depth_renderer_forward.2} parent=5 // pred_check
        %p1536 = pneg %p1535
      $region50: #{delta_depth_renderer_forward.2} parent=5 // pred_check_branch
        %1538 = sbr.rel (%p1536) target = $region52
      $region51: #{delta_depth_renderer_forward.2} parent=5 // pred_region
        %s1539 = ssub.s32 %s15, 2
        // Predicated region
        $region53: #{delta_depth_renderer_forward.2} parent=51 // pred_check
          %p1540 = pneg %p122
        $region54: #{delta_depth_renderer_forward.2} parent=51 // pred_check_branch
          %1542 = sbr.rel (%p1540) target = $region56
        $region55: #{delta_depth_renderer_forward.2} parent=51 // pred_region
          %s1543 = smul.u32 32, %s21
          %p1544 = scmp.lt.s32.totalorder %s1543, 63
          %s1545 = scalar_select %p1544, %s1543, 63
          %s1546 = smul.addr %s1545, 8
          %s1547 = scalar_lea.vmem %s3, %s1546
        $region56: #{delta_depth_renderer_forward.2} parent=51 // pred_fallthru
          _
      $region52: #{delta_depth_renderer_forward.2} parent=5 // pred_fallthru
        _
    $region6: #{delta_depth_renderer_forward.2} parent=1 // loop_footer
      %s19 = sadd.s32 1, %s15
    $region7: #{delta_depth_renderer_forward.2} parent=1 // loop_footer_branch
      %14 = sbr.rel target = $region3
    $region8: #{delta_depth_renderer_forward.2} parent=1 // loop_exit
      _
    %1548 = vsyncpa [#allocation3], 1
    %s1549 = scalar_lea.sflag [#allocation3], 1
    %1550 = vsyncpa %s1549, 1
    %1551 = vsyncpa [#allocation5], 1
    %s1552 = scalar_lea.sflag [#allocation5], 1
    %1553 = vsyncpa %s1552, 1

</llo_original>
